<compile_context>
chip_gen: v6e
topology: v6e:2x2x1
jax: 0.10.0
libtpu: 0.0.40
codegen_flags: <defaults>
</compile_context>

<pallas_src>
import math

import numpy as np

import jax
import jax.numpy as jnp
from jax.experimental import pallas as pl
from jax.experimental.pallas import tpu as pltpu


# ----------------------------------------------------------------------------
# Host-side helpers
# ----------------------------------------------------------------------------
def _build_band(w_flat, H, W, HW_pad, K=7, P=3):
    """Banded conv matrix B (2*HW_pad, HW_pad).

    B[c*HW_pad + src, out] = w[c, kh, kw] whenever output pixel `out` reads
    source pixel `src` through tap (kh, kw) of channel c (zero padding is
    simply encoded as an absent entry).  Then
        conv_flat = p_max @ B[:HW_pad] + p_sum @ B[HW_pad:]
    (1/C for the mean channel and the BN scale are already folded into w).
    """
    h = np.arange(H).reshape(H, 1, 1, 1)
    w_ = np.arange(W).reshape(1, W, 1, 1)
    kh = np.arange(K).reshape(1, 1, K, 1)
    kw = np.arange(K).reshape(1, 1, 1, K)
    sh = h + kh - P                                    # source row
    sw = w_ + kw - P                                   # source col
    valid = (sh >= 0) & (sh < H) & (sw >= 0) & (sw < W)        # (H,W,K,K)
    out_idx = np.broadcast_to(h * W + w_, (H, W, K, K))[valid]
    src_idx = np.broadcast_to(sh * W + sw, (H, W, K, K))[valid]
    tap_idx = np.broadcast_to(kh * K + kw, (H, W, K, K))[valid]

    rows = np.concatenate([src_idx, HW_pad + src_idx]).astype(np.int32)
    cols = np.concatenate([out_idx, out_idx]).astype(np.int32)
    widx = np.concatenate([tap_idx, K * K + tap_idx]).astype(np.int32)

    band = jnp.zeros((2 * HW_pad, HW_pad), jnp.float32)
    return band.at[rows, cols].set(w_flat[widx])


def _chip_info():
    """Return (vmem_capacity_bytes or None, multi_tensorcore?)."""
    vmem_cap = None
    try:
        vmem_cap = int(pltpu.get_tpu_info().vmem_capacity_bytes)
    except Exception:
        pass
    kind = ""
    try:
        kind = jax.devices()[0].device_kind.lower()
    except Exception:
        pass
    # Chips whose grid is fed by >1 TensorCore (megacore v4/v5p, dual-TC v7x).
    multi_tc = any(tag in kind for tag in ("v4", "v5p", "7"))
    return vmem_cap, multi_tc


def _pick_block(N, C, HW_pad, itemsize):
    """Samples per grid step + explicit scoped-VMEM limit.

    Budget counts: double-buffered input block, double-buffered output block,
    the (double-buffer-worst-case) band, and ~8 f32 (bn, HW_pad) intermediate
    planes, against 3/4 of physical VMEM (or a conservative 14 MiB if the
    chip cannot be queried -- under the smallest scoped default, v5e's 16 MiB).
    """
    vmem_cap, multi_tc = _chip_info()
    if vmem_cap is None:
        vmem_limit = None
        usable = 14 << 20
    else:
        vmem_limit = min(vmem_cap * 3 // 4, 96 << 20)   # 96 MiB v5e/v6e, 48 MiB v7x
        usable = vmem_limit

    band_bytes = 2 * (2 * HW_pad * HW_pad * 4)
    per_sample = (4 * C * HW_pad * max(int(itemsize), 4)   # 2x in + 2x out blocks
                  + 8 * HW_pad * 4)                        # f32 intermediates
    budget = max(usable // 2 - band_bytes, 1 << 20)

    bn = max(1, min(N, budget // per_sample))
    if multi_tc and N >= 4:
        # >= 4 grid steps so each of the 2 TensorCores still gets >= 2 steps
        # of double-buffer overlap.  Single-TC chips keep the largest block.
        bn = min(bn, N // 4)
    while N % bn:                   # largest divisor of N not exceeding bn
        bn -= 1
    return bn, vmem_limit


# ----------------------------------------------------------------------------
# Kernel
# ----------------------------------------------------------------------------
def _make_spatial_gate_kernel(BN, C, HWp):
    # Channel chunking so any f32 x-slab held live stays <= ~2 MiB.
    cap = max(1, (2 << 20) // (BN * HWp * 4))
    c_chunk = min(C, cap)
    while C % c_chunk:
        c_chunk -= 1
    n_cch = C // c_chunk

    def kernel(x_ref, band_ref, b_ref, o_ref):
        # ---- channel pool: max & sum (1/C is folded into the band) ---------
        if n_cch == 1:
            x = x_ref[...].astype(jnp.float32)                  # (BN, C, HWp)
            p_max = jnp.max(x, axis=1)                          # (BN, HWp)
            p_sum = jnp.sum(x, axis=1)                          # (BN, HWp)
        else:
            def pool_body(ci, carry):
                m, s = carry
                c0 = pl.multiple_of(ci * c_chunk, c_chunk)
                xc = x_ref[:, pl.ds(c0, c_chunk), :].astype(jnp.float32)
                return (jnp.maximum(m, jnp.max(xc, axis=1)),
                        s + jnp.sum(xc, axis=1))
            p_max, p_sum = jax.lax.fori_loop(
                0, n_cch, pool_body,
                (jnp.full((BN, HWp), -jnp.inf, jnp.float32),
                 jnp.zeros((BN, HWp), jnp.float32)))

        # ---- 7x7 conv (+ folded BN scale) as two MXU matmuls ---------------
        conv = jnp.dot(p_max, band_ref[pl.ds(0, HWp), :],
                       preferred_element_type=jnp.float32,
                       precision=jax.lax.Precision.HIGHEST)
        conv = conv + jnp.dot(p_sum, band_ref[pl.ds(HWp, HWp), :],
                              preferred_element_type=jnp.float32,
                              precision=jax.lax.Precision.HIGHEST)
        scale = jax.nn.sigmoid(conv + b_ref[0])                 # (BN, HWp)

        # ---- gate: broadcast over C, lane-dense store -----------------------
        if n_cch == 1:
            o_ref[...] = (x * scale[:, None, :]).astype(o_ref.dtype)
        else:
            def gate_body(ci, _):
                c0 = pl.multiple_of(ci * c_chunk, c_chunk)
                xc = x_ref[:, pl.ds(c0, c_chunk), :].astype(jnp.float32)
                o_ref[:, pl.ds(c0, c_chunk), :] = (
                    xc * scale[:, None, :]).astype(o_ref.dtype)
                return 0
            jax.lax.fori_loop(0, n_cch, gate_body, 0)

    return kernel


# ----------------------------------------------------------------------------
# Wrapper
# ----------------------------------------------------------------------------
def spatial_gate(x, conv_w, conv_b, bn_gamma, bn_beta, bn_mean, bn_var,
                 eps=1e-5):
    """x: (N, C, H, W).  conv_w: (1, 2, 7, 7), conv_b: (1,).  BN params: (1,)."""
    N, C, H, W = x.shape
    K, P = 7, 3
    HW = H * W
    HW_pad = ((HW + 127) // 128) * 128          # lane-dense spatial axis

    # Fold inference-mode BatchNorm and the channel-mean 1/C into the conv
    # weights / bias on the host (the conv is linear).
    s = (bn_gamma / jnp.sqrt(bn_var + eps)).astype(jnp.float32)        # (1,)
    w_folded = conv_w[0].astype(jnp.float32) * s[0]                    # (2,K,K)
    w_folded = w_folded * jnp.array([1.0, 1.0 / C], jnp.float32)[:, None, None]
    w_flat = w_folded.reshape(-1)                                      # (2*K*K,)
    b_folded = ((conv_b - bn_mean) * s + bn_beta).astype(jnp.float32)  # (1,)

    band = _build_band(w_flat, H, W, HW_pad, K=K, P=P)   # (2*HW_pad, HW_pad)

    # Lane-dense flattened (and 128-padded) spatial view.
    x_flat = x.reshape(N, C, HW)
    if HW_pad != HW:
        x_flat = jnp.pad(x_flat, ((0, 0), (0, 0), (0, HW_pad - HW)))

    bn_blk, vmem_limit = _pick_block(N, C, HW_pad, x.dtype.itemsize)
    grid = (N // bn_blk,)
    kernel = _make_spatial_gate_kernel(bn_blk, C, HW_pad)

    grid_spec = pltpu.PrefetchScalarGridSpec(
        num_scalar_prefetch=0,
        grid=grid,
        in_specs=[
            # bn_blk samples per step, full (C, HW_pad) slab each
            pl.BlockSpec((bn_blk, C, HW_pad), lambda n: (n, 0, 0)),
            # constant block index -> band is DMA'd to VMEM once, not per step
            pl.BlockSpec((2 * HW_pad, HW_pad), lambda n: (0, 0)),
            # 4-byte folded bias stays in SMEM for the whole call
            pl.BlockSpec(memory_space=pltpu.MemorySpace.SMEM),
        ],
        out_specs=pl.BlockSpec((bn_blk, C, HW_pad), lambda n: (n, 0, 0)),
    )

    cp_kwargs = dict(dimension_semantics=("parallel",))
    if vmem_limit is not None:
        cp_kwargs["vmem_limit_bytes"] = int(vmem_limit)

    out_flat = pl.pallas_call(
        kernel,
        out_shape=jax.ShapeDtypeStruct((N, C, HW_pad), x.dtype),
        grid_spec=grid_spec,
        compiler_params=pltpu.CompilerParams(**cp_kwargs),
    )(x_flat, band, b_folded)

    if HW_pad != HW:
        out_flat = out_flat[:, :, :HW]
    return out_flat.reshape(N, C, H, W)


# ----------------------------------------------------------------------------
# Pure-JAX reference (inference-mode BN), and self-test
# ----------------------------------------------------------------------------
def _reference(x, conv_w, conv_b, bn_gamma, bn_beta, bn_mean, bn_var,
               eps=1e-5):
    pooled = jnp.concatenate(
        [x.max(axis=1, keepdims=True), x.mean(axis=1, keepdims=True)], axis=1)
    conv = jax.lax.conv_general_dilated(
        pooled, conv_w, window_strides=(1, 1), padding=[(3, 3), (3, 3)],
        dimension_numbers=("NCHW", "OIHW", "NCHW"),
        precision=jax.lax.Precision.HIGHEST)
    conv = conv + conv_b.reshape(1, 1, 1, 1)
    bn = (conv - bn_mean.reshape(1, 1, 1, 1)) / jnp.sqrt(
        bn_var.reshape(1, 1, 1, 1) + eps)
    bn = bn * bn_gamma.reshape(1, 1, 1, 1) + bn_beta.reshape(1, 1, 1, 1)
    return x * jax.nn.sigmoid(bn)


if __name__ == "__main__":
    N, C, H, W = 2, 4, 16, 16

    key = jax.random.PRNGKey(0)
    kx, kw, kb = jax.random.split(key, 3)

    x = jax.random.normal(kx, (N, C, H, W), dtype=jnp.float32)

    # Conv2d(2, 1, kernel_size=7) parameters, deterministic uniform init
    fan_in = 2 * 7 * 7
    bound = 1.0 / math.sqrt(fan_in)
    conv_w = jax.random.uniform(kw, (1, 2, 7, 7), jnp.float32, -bound, bound)
    conv_b = jax.random.uniform(kb, (1,), jnp.float32, -bound, bound)

    # BatchNorm2d(1) parameters at PyTorch initialization values
    bn_gamma = jnp.ones((1,), jnp.float32)
    bn_beta = jnp.zeros((1,), jnp.float32)
    bn_mean = jnp.zeros((1,), jnp.float32)
    bn_var = jnp.ones((1,), jnp.float32)

    out = spatial_gate(x, conv_w, conv_b, bn_gamma, bn_beta, bn_mean, bn_var)
    out = jax.block_until_ready(out)

    ref = _reference(x, conv_w, conv_b, bn_gamma, bn_beta, bn_mean, bn_var)
    max_err = float(jnp.max(jnp.abs(out - ref)))
    # f32 path end-to-end (f32 MXU accumulation, precision=HIGHEST); use a
    # dtype-appropriate (larger) tolerance if x is bf16.
    assert max_err < 1e-4, f"mismatch vs reference: {max_err}"

    print("KERNEL_OK")
</pallas_src>

<mosaic_0001>
module attributes {stable_mosaic.version = 11 : i64} {
  func.func @kernel(%arg0: i32, %arg1: memref<2x4x256xf32, #tpu.memory_space<vmem>>, %arg2: memref<512x256xf32, #tpu.memory_space<vmem>>, %arg3: memref<1xf32, #tpu.memory_space<smem>>, %arg4: memref<2x4x256xf32, #tpu.memory_space<vmem>>) attributes {dimension_semantics = [#tpu.dimension_semantics<parallel>], iteration_bounds = array<i64: 1>, scalar_prefetch = 0 : i64, scratch_operands = 0 : i64, tpu.core_type = #tpu.core_type<tc>, window_params = [{transform_indices = @transform_0, window_bounds = array<i64: 2, 4, 256>}, {pipeline_mode = #tpu.pipeline_mode<synchronous>, transform_indices = @transform_1, window_bounds = array<i64: 512, 256>}, {transform_indices = @transform_2, window_bounds = array<i64: 1>}, {transform_indices = @transform_3, window_bounds = array<i64: 2, 4, 256>}]} {
    %c0 = arith.constant 0 : index
    %c0_0 = arith.constant 0 : index
    %c0_1 = arith.constant 0 : index
    %0 = vector.load %arg1[%c0, %c0_0, %c0_1] : memref<2x4x256xf32, #tpu.memory_space<vmem>>, vector<2x4x256xf32>
    %cst = arith.constant dense<0xFF800000> : vector<2x256xf32>
    %1 = vector.multi_reduction <maximumf>, %0, %cst [1] : vector<2x4x256xf32> to vector<2x256xf32>
    %cst_2 = arith.constant dense<0.000000e+00> : vector<2x256xf32>
    %2 = vector.multi_reduction <add>, %0, %cst_2 [1] : vector<2x4x256xf32> to vector<2x256xf32>
    %c0_3 = arith.constant 0 : index
    %c0_4 = arith.constant 0 : index
    %3 = vector.load %arg2[%c0_3, %c0_4] : memref<512x256xf32, #tpu.memory_space<vmem>>, vector<256x256xf32>
    %cst_5 = arith.constant dense<0.000000e+00> : vector<2x256xf32>
    %4 = tpu.matmul %1, %3, %cst_5 {dimension_numbers = #tpu.dot_dimension_numbers<[1], [0], [0], [1], [0, 0, 1, 1], [], []>, precision = #tpu.contract_precision<fp32>} : vector<2x256xf32>, vector<256x256xf32>, vector<2x256xf32> -> vector<2x256xf32>
    %c256 = arith.constant 256 : index
    %c0_6 = arith.constant 0 : index
    %5 = vector.load %arg2[%c256, %c0_6] : memref<512x256xf32, #tpu.memory_space<vmem>>, vector<256x256xf32>
    %cst_7 = arith.constant dense<0.000000e+00> : vector<2x256xf32>
    %6 = tpu.matmul %2, %5, %cst_7 {dimension_numbers = #tpu.dot_dimension_numbers<[1], [0], [0], [1], [0, 0, 1, 1], [], []>, precision = #tpu.contract_precision<fp32>} : vector<2x256xf32>, vector<256x256xf32>, vector<2x256xf32> -> vector<2x256xf32>
    %7 = arith.addf %4, %6 : vector<2x256xf32>
    %c0_8 = arith.constant 0 : index
    %8 = memref.load %arg3[%c0_8] : memref<1xf32, #tpu.memory_space<smem>>
    %9 = vector.broadcast %8 : f32 to vector<2x256xf32>
    %10 = arith.addf %7, %9 : vector<2x256xf32>
    %11 = arith.negf %10 : vector<2x256xf32>
    %12 = math.exp %11 : vector<2x256xf32>
    %cst_9 = arith.constant 1.000000e+00 : f32
    %13 = vector.broadcast %cst_9 : f32 to vector<2x256xf32>
    %14 = arith.addf %13, %12 : vector<2x256xf32>
    %15 = arith.divf %13, %14 : vector<2x256xf32>
    %16 = vector.shape_cast %15 : vector<2x256xf32> to vector<2x1x256xf32>
    %17 = vector.broadcast %16 : vector<2x1x256xf32> to vector<2x4x256xf32>
    %18 = arith.mulf %0, %17 : vector<2x4x256xf32>
    %c0_10 = arith.constant 0 : index
    %c0_11 = arith.constant 0 : index
    %c0_12 = arith.constant 0 : index
    %19 = vector.load %arg4[%c0_10, %c0_11, %c0_12] : memref<2x4x256xf32, #tpu.memory_space<vmem>>, vector<2x4x256xf32>
    tpu.vector_store %arg4[%c0_10, %c0_11, %c0_12], %18 {strides = array<i32>} : memref<2x4x256xf32, #tpu.memory_space<vmem>>, vector<2x4x256xf32>,
    return
  }
  func.func @transform_0(%arg0: i32) -> (i32, i32, i32) {
    %c0_i32 = arith.constant 0 : i32
    %c0_i32_0 = arith.constant 0 : i32
    %c0_i32_1 = arith.constant 0 : i32
    return %arg0, %c0_i32, %c0_i32_0 : i32, i32, i32
  }
  func.func @transform_1(%arg0: i32) -> (i32, i32) {
    %c0_i32 = arith.constant 0 : i32
    %c0_i32_0 = arith.constant 0 : i32
    %c0_i32_1 = arith.constant 0 : i32
    return %c0_i32, %c0_i32_0 : i32, i32
  }
  func.func @transform_2(%arg0: i32) -> i32 {
    %c0_i32 = arith.constant 0 : i32
    %c0_i32_0 = arith.constant 0 : i32
    return %c0_i32 : i32
  }
  func.func @transform_3(%arg0: i32) -> (i32, i32, i32) {
    %c0_i32 = arith.constant 0 : i32
    %c0_i32_0 = arith.constant 0 : i32
    %c0_i32_1 = arith.constant 0 : i32
    return %arg0, %c0_i32, %c0_i32_0 : i32, i32, i32
  }
}

</mosaic_0001>

<llo_original>
// kernel: tpu_custom_call.1
$region0: #{tpu_custom_call.1}
  #allocation0 [shape = 'u32[]', space=smem, size = 0x4, offset = 0x4, fixed_abs, tag = 'smem constant byte address 0x4 - core index']
  #allocation1 [shape = 'u32[144,128]{1,0:T(1,128)}', space=vmem, size = 0x12000, scoped, tag = 'internal scratch']
  #allocation2 [shape = 'f32[1]{0:T(128)S(6)}', space=smem, size = 0x200, scoped, tag = 'scoped memory for tpu_custom_call.1']
  %s0 = inlined_call_operand.hbm [shape: f32[2,4,256], index: 0, kind: input, shape index: {}]
  %s1 = inlined_call_operand.hbm [shape: f32[512,256], index: 1, kind: input, shape index: {}]
  %s2 = inlined_call_operand.<no memory space> [shape: f32[1], index: 2, kind: input, shape index: {}]
  %s3 = inlined_call_operand.hbm [shape: f32[2,4,256], index: 3, kind: output, shape index: {}]
  %s4 = sld [smem:[#allocation0]]
  $region30: #{tpu_custom_call.1} parent=0
    _
  %s6 = ssub.s32 1, %s4
  %s7 = scalar_select 0, %s6, %s4
  %8 = sst [smem:[#allocation2]] %s2
  $region1: #{tpu_custom_call.1} parent=0
    #allocation3 [shape = 'u8[8192]{0}', space=vmem, size = 0x2000, scoped, tag = 'input window, operand 0, single buffered']
    #allocation4 [shape = 's32[1]{0}', space=sflag, size = 0x4, scoped, tag = 'scoped memory for tpu_custom_call.1']
    #allocation5 [shape = 's32[1]{0}', space=sflag, size = 0x4, scoped, tag = 'scoped memory for tpu_custom_call.1']
    #allocation6 [shape = 'u8[524288]{0}', space=vmem, size = 0x80000, scoped, tag = 'input window, operand 1, single buffered']
    #allocation7 [shape = 's32[1]{0}', space=sflag, size = 0x4, scoped, tag = 'scoped memory for tpu_custom_call.1']
    #allocation8 [shape = 'u8[8192]{0}', space=vmem, size = 0x2000, scoped, tag = 'output window, operand 0, single buffered']
    %9 = vsyncpa [#allocation4], 0
    %10 = vsyncpa [#allocation7], 0
    %11 = vsyncpa [#allocation5], 0
    // Predicated region
    $region2: #{tpu_custom_call.1} parent=1 // pred_check
      _
    $region3: #{tpu_custom_call.1} parent=1 // pred_check_branch
      %13 = sbr.rel (0) target = $region5
    $region4: #{tpu_custom_call.1} parent=1 // pred_region
      %s15 = ssub.s32 256, 256
      %16 = vsyncadd [#allocation4], %s15
      %s17 = sshll.u32 [#allocation3], 4
      %s18 = int_to_ptr.vmem [resolvable:$true] %s17
      %23 = dma.hbm_to_vmem [thread:$0]  %s0, 256, %s18, [#allocation4], 128, 128, 8
    $region5: #{tpu_custom_call.1} parent=1 // pred_fallthru
      _
    // Predicated region
    $region6: #{tpu_custom_call.1} parent=1 // pred_check
      _
    $region7: #{tpu_custom_call.1} parent=1 // pred_check_branch
      %25 = sbr.rel (0) target = $region9
    $region8: #{tpu_custom_call.1} parent=1 // pred_region
      %s27 = ssub.s32 16384, 16384
      %28 = vsyncadd [#allocation7], %s27
      %s29 = sshll.u32 [#allocation6], 4
      %s30 = int_to_ptr.vmem [resolvable:$true] %s29
      %35 = dma.hbm_to_vmem [thread:$0]  %s1, 16384, %s30, [#allocation7], 256, 256, 16
    $region9: #{tpu_custom_call.1} parent=1 // pred_fallthru
      _
    // Predicated region
    $region10: #{tpu_custom_call.1} parent=1 // pred_check
      _
    $region11: #{tpu_custom_call.1} parent=1 // pred_check_branch
      %37 = sbr.rel (0) target = $region13
    $region12: #{tpu_custom_call.1} parent=1 // pred_region
      _
    $region13: #{tpu_custom_call.1} parent=1 // pred_fallthru
      _
    // Predicated region
    $region14: #{tpu_custom_call.1} parent=1 // pred_check
      _
    $region15: #{tpu_custom_call.1} parent=1 // pred_check_branch
      %39 = sbr.rel (0) target = $region17
    $region16: #{tpu_custom_call.1} parent=1 // pred_region
      %40 = dma.done [#allocation4], 256
    $region17: #{tpu_custom_call.1} parent=1 // pred_fallthru
      _
    // Predicated region
    $region18: #{tpu_custom_call.1} parent=1 // pred_check
      _
    $region19: #{tpu_custom_call.1} parent=1 // pred_check_branch
      %42 = sbr.rel (0) target = $region21
    $region20: #{tpu_custom_call.1} parent=1 // pred_region
      %43 = dma.done [#allocation7], 16384
    $region21: #{tpu_custom_call.1} parent=1 // pred_fallthru
      _
    %v44 = vld [vmem:[#allocation3] sm:$0xff]
    %v45 = vld [vmem:[#allocation3 + $0x8] sm:$0xff]
    %v48 = vcombine.high %v44, %v44
    %v49 = vcombine.high %v45, %v45
    %vm52 = vcmask 1043456
    %v53 = vsel %vm52, %v44, -inf
    %v54 = vrot.slane %v53, 4
    %v55 = vmax.f32 %v53, %v54
    %v56 = vrot.slane %v55, 2
    %v57 = vmax.f32 %v55, %v56
    %v58 = vrot.slane %v57, 1
    %v59 = vmax.f32 %v57, %v58
    %v60 = vsel %vm52, %v48, -inf
    %v61 = vrot.slane %v60, 4
    %v62 = vmax.f32 %v60, %v61
    %v63 = vrot.slane %v62, 2
    %v64 = vmax.f32 %v62, %v63
    %v65 = vrot.slane %v64, 1
    %v66 = vmax.f32 %v64, %v65
    %v67 = vsel %vm52, %v45, -inf
    %v68 = vrot.slane %v67, 4
    %v69 = vmax.f32 %v67, %v68
    %v70 = vrot.slane %v69, 2
    %v71 = vmax.f32 %v69, %v70
    %v72 = vrot.slane %v71, 1
    %v73 = vmax.f32 %v71, %v72
    %v74 = vsel %vm52, %v49, -inf
    %v75 = vrot.slane %v74, 4
    %v76 = vmax.f32 %v74, %v75
    %v77 = vrot.slane %v76, 2
    %v78 = vmax.f32 %v76, %v77
    %v79 = vrot.slane %v78, 1
    %v80 = vmax.f32 %v78, %v79
    %v81 = vsel %vm52, %v44, 0.0
    %v82 = vrot.slane %v81, 4
    %v83 = vadd.f32 %v81, %v82
    %v84 = vrot.slane %v83, 2
    %v85 = vadd.f32 %v83, %v84
    %v86 = vrot.slane %v85, 1
    %v87 = vadd.f32 %v85, %v86
    %v88 = vsel %vm52, %v48, 0.0
    %v89 = vrot.slane %v88, 4
    %v90 = vadd.f32 %v88, %v89
    %v91 = vrot.slane %v90, 2
    %v92 = vadd.f32 %v90, %v91
    %v93 = vrot.slane %v92, 1
    %v94 = vadd.f32 %v92, %v93
    %v95 = vsel %vm52, %v45, 0.0
    %v96 = vrot.slane %v95, 4
    %v97 = vadd.f32 %v95, %v96
    %v98 = vrot.slane %v97, 2
    %v99 = vadd.f32 %v97, %v98
    %v100 = vrot.slane %v99, 1
    %v101 = vadd.f32 %v99, %v100
    %v102 = vsel %vm52, %v49, 0.0
    %v103 = vrot.slane %v102, 4
    %v104 = vadd.f32 %v102, %v103
    %v105 = vrot.slane %v104, 2
    %v106 = vadd.f32 %v104, %v105
    %v107 = vrot.slane %v106, 1
    %v108 = vadd.f32 %v106, %v107
    %v109 = vld [vmem:[#allocation6] sm:$0xff]
    %v110 = vld [vmem:[#allocation6 + $0x8] sm:$0xff]
    %v111 = vld [vmem:[#allocation6 + $0x10] sm:$0xff]
    %v112 = vld [vmem:[#allocation6 + $0x18] sm:$0xff]
    %v113 = vld [vmem:[#allocation6 + $0x20] sm:$0xff]
    %v114 = vld [vmem:[#allocation6 + $0x28] sm:$0xff]
    %v115 = vld [vmem:[#allocation6 + $0x30] sm:$0xff]
    %v116 = vld [vmem:[#allocation6 + $0x38] sm:$0xff]
    %v117 = vld [vmem:[#allocation6 + $0x40] sm:$0xff]
    %v118 = vld [vmem:[#allocation6 + $0x48] sm:$0xff]
    %v119 = vld [vmem:[#allocation6 + $0x50] sm:$0xff]
    %v120 = vld [vmem:[#allocation6 + $0x58] sm:$0xff]
    %v121 = vld [vmem:[#allocation6 + $0x60] sm:$0xff]
    %v122 = vld [vmem:[#allocation6 + $0x68] sm:$0xff]
    %v123 = vld [vmem:[#allocation6 + $0x70] sm:$0xff]
    %v124 = vld [vmem:[#allocation6 + $0x78] sm:$0xff]
    %v125 = vld [vmem:[#allocation6 + $0x80] sm:$0xff]
    %v126 = vld [vmem:[#allocation6 + $0x88] sm:$0xff]
    %v127 = vld [vmem:[#allocation6 + $0x90] sm:$0xff]
    %v128 = vld [vmem:[#allocation6 + $0x98] sm:$0xff]
    %v129 = vld [vmem:[#allocation6 + $0xa0] sm:$0xff]
    %v130 = vld [vmem:[#allocation6 + $0xa8] sm:$0xff]
    %v131 = vld [vmem:[#allocation6 + $0xb0] sm:$0xff]
    %v132 = vld [vmem:[#allocation6 + $0xb8] sm:$0xff]
    %v133 = vld [vmem:[#allocation6 + $0xc0] sm:$0xff]
    %v134 = vld [vmem:[#allocation6 + $0xc8] sm:$0xff]
    %v135 = vld [vmem:[#allocation6 + $0xd0] sm:$0xff]
    %v136 = vld [vmem:[#allocation6 + $0xd8] sm:$0xff]
    %v137 = vld [vmem:[#allocation6 + $0xe0] sm:$0xff]
    %v138 = vld [vmem:[#allocation6 + $0xe8] sm:$0xff]
    %v139 = vld [vmem:[#allocation6 + $0xf0] sm:$0xff]
    %v140 = vld [vmem:[#allocation6 + $0xf8] sm:$0xff]
    %v141 = vld [vmem:[#allocation6 + $0x100] sm:$0xff]
    %v142 = vld [vmem:[#allocation6 + $0x108] sm:$0xff]
    %v143 = vld [vmem:[#allocation6 + $0x110] sm:$0xff]
    %v144 = vld [vmem:[#allocation6 + $0x118] sm:$0xff]
    %v145 = vld [vmem:[#allocation6 + $0x120] sm:$0xff]
    %v146 = vld [vmem:[#allocation6 + $0x128] sm:$0xff]
    %v147 = vld [vmem:[#allocation6 + $0x130] sm:$0xff]
    %v148 = vld [vmem:[#allocation6 + $0x138] sm:$0xff]
    %v149 = vld [vmem:[#allocation6 + $0x140] sm:$0xff]
    %v150 = vld [vmem:[#allocation6 + $0x148] sm:$0xff]
    %v151 = vld [vmem:[#allocation6 + $0x150] sm:$0xff]
    %v152 = vld [vmem:[#allocation6 + $0x158] sm:$0xff]
    %v153 = vld [vmem:[#allocation6 + $0x160] sm:$0xff]
    %v154 = vld [vmem:[#allocation6 + $0x168] sm:$0xff]
    %v155 = vld [vmem:[#allocation6 + $0x170] sm:$0xff]
    %v156 = vld [vmem:[#allocation6 + $0x178] sm:$0xff]
    %v157 = vld [vmem:[#allocation6 + $0x180] sm:$0xff]
    %v158 = vld [vmem:[#allocation6 + $0x188] sm:$0xff]
    %v159 = vld [vmem:[#allocation6 + $0x190] sm:$0xff]
    %v160 = vld [vmem:[#allocation6 + $0x198] sm:$0xff]
    %v161 = vld [vmem:[#allocation6 + $0x1a0] sm:$0xff]
    %v162 = vld [vmem:[#allocation6 + $0x1a8] sm:$0xff]
    %v163 = vld [vmem:[#allocation6 + $0x1b0] sm:$0xff]
    %v164 = vld [vmem:[#allocation6 + $0x1b8] sm:$0xff]
    %v165 = vld [vmem:[#allocation6 + $0x1c0] sm:$0xff]
    %v166 = vld [vmem:[#allocation6 + $0x1c8] sm:$0xff]
    %v167 = vld [vmem:[#allocation6 + $0x1d0] sm:$0xff]
    %v168 = vld [vmem:[#allocation6 + $0x1d8] sm:$0xff]
    %v169 = vld [vmem:[#allocation6 + $0x1e0] sm:$0xff]
    %v170 = vld [vmem:[#allocation6 + $0x1e8] sm:$0xff]
    %v171 = vld [vmem:[#allocation6 + $0x1f0] sm:$0xff]
    %v172 = vld [vmem:[#allocation6 + $0x1f8] sm:$0xff]
    %v173 = vld [vmem:[#allocation6 + $0x200] sm:$0xff]
    %v174 = vld [vmem:[#allocation6 + $0x208] sm:$0xff]
    %v175 = vld [vmem:[#allocation6 + $0x210] sm:$0xff]
    %v176 = vld [vmem:[#allocation6 + $0x218] sm:$0xff]
    %v177 = vld [vmem:[#allocation6 + $0x220] sm:$0xff]
    %v178 = vld [vmem:[#allocation6 + $0x228] sm:$0xff]
    %v179 = vld [vmem:[#allocation6 + $0x230] sm:$0xff]
    %v180 = vld [vmem:[#allocation6 + $0x238] sm:$0xff]
    %v181 = vld [vmem:[#allocation6 + $0x240] sm:$0xff]
    %v182 = vld [vmem:[#allocation6 + $0x248] sm:$0xff]
    %v183 = vld [vmem:[#allocation6 + $0x250] sm:$0xff]
    %v184 = vld [vmem:[#allocation6 + $0x258] sm:$0xff]
    %v185 = vld [vmem:[#allocation6 + $0x260] sm:$0xff]
    %v186 = vld [vmem:[#allocation6 + $0x268] sm:$0xff]
    %v187 = vld [vmem:[#allocation6 + $0x270] sm:$0xff]
    %v188 = vld [vmem:[#allocation6 + $0x278] sm:$0xff]
    %v189 = vld [vmem:[#allocation6 + $0x280] sm:$0xff]
    %v190 = vld [vmem:[#allocation6 + $0x288] sm:$0xff]
    %v191 = vld [vmem:[#allocation6 + $0x290] sm:$0xff]
    %v192 = vld [vmem:[#allocation6 + $0x298] sm:$0xff]
    %v193 = vld [vmem:[#allocation6 + $0x2a0] sm:$0xff]
    %v194 = vld [vmem:[#allocation6 + $0x2a8] sm:$0xff]
    %v195 = vld [vmem:[#allocation6 + $0x2b0] sm:$0xff]
    %v196 = vld [vmem:[#allocation6 + $0x2b8] sm:$0xff]
    %v197 = vld [vmem:[#allocation6 + $0x2c0] sm:$0xff]
    %v198 = vld [vmem:[#allocation6 + $0x2c8] sm:$0xff]
    %v199 = vld [vmem:[#allocation6 + $0x2d0] sm:$0xff]
    %v200 = vld [vmem:[#allocation6 + $0x2d8] sm:$0xff]
    %v201 = vld [vmem:[#allocation6 + $0x2e0] sm:$0xff]
    %v202 = vld [vmem:[#allocation6 + $0x2e8] sm:$0xff]
    %v203 = vld [vmem:[#allocation6 + $0x2f0] sm:$0xff]
    %v204 = vld [vmem:[#allocation6 + $0x2f8] sm:$0xff]
    %v205 = vld [vmem:[#allocation6 + $0x300] sm:$0xff]
    %v206 = vld [vmem:[#allocation6 + $0x308] sm:$0xff]
    %v207 = vld [vmem:[#allocation6 + $0x310] sm:$0xff]
    %v208 = vld [vmem:[#allocation6 + $0x318] sm:$0xff]
    %v209 = vld [vmem:[#allocation6 + $0x320] sm:$0xff]
    %v210 = vld [vmem:[#allocation6 + $0x328] sm:$0xff]
    %v211 = vld [vmem:[#allocation6 + $0x330] sm:$0xff]
    %v212 = vld [vmem:[#allocation6 + $0x338] sm:$0xff]
    %v213 = vld [vmem:[#allocation6 + $0x340] sm:$0xff]
    %v214 = vld [vmem:[#allocation6 + $0x348] sm:$0xff]
    %v215 = vld [vmem:[#allocation6 + $0x350] sm:$0xff]
    %v216 = vld [vmem:[#allocation6 + $0x358] sm:$0xff]
    %v217 = vld [vmem:[#allocation6 + $0x360] sm:$0xff]
    %v218 = vld [vmem:[#allocation6 + $0x368] sm:$0xff]
    %v219 = vld [vmem:[#allocation6 + $0x370] sm:$0xff]
    %v220 = vld [vmem:[#allocation6 + $0x378] sm:$0xff]
    %v221 = vld [vmem:[#allocation6 + $0x380] sm:$0xff]
    %v222 = vld [vmem:[#allocation6 + $0x388] sm:$0xff]
    %v223 = vld [vmem:[#allocation6 + $0x390] sm:$0xff]
    %v224 = vld [vmem:[#allocation6 + $0x398] sm:$0xff]
    %v225 = vld [vmem:[#allocation6 + $0x3a0] sm:$0xff]
    %v226 = vld [vmem:[#allocation6 + $0x3a8] sm:$0xff]
    %v227 = vld [vmem:[#allocation6 + $0x3b0] sm:$0xff]
    %v228 = vld [vmem:[#allocation6 + $0x3b8] sm:$0xff]
    %v229 = vld [vmem:[#allocation6 + $0x3c0] sm:$0xff]
    %v230 = vld [vmem:[#allocation6 + $0x3c8] sm:$0xff]
    %v231 = vld [vmem:[#allocation6 + $0x3d0] sm:$0xff]
    %v232 = vld [vmem:[#allocation6 + $0x3d8] sm:$0xff]
    %v233 = vld [vmem:[#allocation6 + $0x3e0] sm:$0xff]
    %v234 = vld [vmem:[#allocation6 + $0x3e8] sm:$0xff]
    %v235 = vld [vmem:[#allocation6 + $0x3f0] sm:$0xff]
    %v236 = vld [vmem:[#allocation6 + $0x3f8] sm:$0xff]
    %vm241 = vcmask 1041409
    %v242 = vsel %vm241, %v101, %v87
    %v243 = vsel %vm241, %v108, %v94
    %v246 = vand.u32 %v204, 4294901760
    %247 = vmatprep.subr.mxu0 %v246
    %v248 = vand.u32 %v203, 4294901760
    %249 = vmatpush1.msra.mxu0 %v248
    %v250 = vand.u32 %v202, 4294901760
    %251 = vmatprep.subr.mxu0 %v250
    %v252 = vand.u32 %v201, 4294901760
    %253 = vmatpush1.msra.mxu0 %v252
    %v254 = vand.u32 %v200, 4294901760
    %255 = vmatprep.subr.mxu0 %v254
    %v256 = vand.u32 %v199, 4294901760
    %257 = vmatpush1.msra.mxu0 %v256
    %v258 = vand.u32 %v198, 4294901760
    %259 = vmatprep.subr.mxu0 %v258
    %v260 = vand.u32 %v197, 4294901760
    %261 = vmatpush1.msra.mxu0 %v260
    %v262 = vand.u32 %v196, 4294901760
    %263 = vmatprep.subr.mxu0 %v262
    %v264 = vand.u32 %v195, 4294901760
    %265 = vmatpush1.msra.mxu0 %v264
    %v266 = vand.u32 %v194, 4294901760
    %267 = vmatprep.subr.mxu0 %v266
    %v268 = vand.u32 %v193, 4294901760
    %269 = vmatpush1.msra.mxu0 %v268
    %v270 = vand.u32 %v192, 4294901760
    %271 = vmatprep.subr.mxu0 %v270
    %v272 = vand.u32 %v191, 4294901760
    %273 = vmatpush1.msra.mxu0 %v272
    %v274 = vand.u32 %v190, 4294901760
    %275 = vmatprep.subr.mxu0 %v274
    %v276 = vand.u32 %v189, 4294901760
    %277 = vmatpush1.msra.mxu0 %v276
    %v278 = vand.u32 %v188, 4294901760
    %279 = vmatprep.subr.mxu0 %v278
    %v280 = vand.u32 %v187, 4294901760
    %281 = vmatpush1.msra.mxu0 %v280
    %v282 = vand.u32 %v186, 4294901760
    %283 = vmatprep.subr.mxu0 %v282
    %v284 = vand.u32 %v185, 4294901760
    %285 = vmatpush1.msra.mxu0 %v284
    %v286 = vand.u32 %v184, 4294901760
    %287 = vmatprep.subr.mxu0 %v286
    %v288 = vand.u32 %v183, 4294901760
    %289 = vmatpush1.msra.mxu0 %v288
    %v290 = vand.u32 %v182, 4294901760
    %291 = vmatprep.subr.mxu0 %v290
    %v292 = vand.u32 %v181, 4294901760
    %293 = vmatpush1.msra.mxu0 %v292
    %v294 = vand.u32 %v180, 4294901760
    %295 = vmatprep.subr.mxu0 %v294
    %v296 = vand.u32 %v179, 4294901760
    %297 = vmatpush1.msra.mxu0 %v296
    %v298 = vand.u32 %v178, 4294901760
    %299 = vmatprep.subr.mxu0 %v298
    %v300 = vand.u32 %v177, 4294901760
    %301 = vmatpush1.msra.mxu0 %v300
    %v302 = vand.u32 %v176, 4294901760
    %303 = vmatprep.subr.mxu0 %v302
    %v304 = vand.u32 %v175, 4294901760
    %305 = vmatpush1.msra.mxu0 %v304
    %v306 = vand.u32 %v174, 4294901760
    %307 = vmatprep.subr.mxu0 %v306
    %v308 = vand.u32 %v173, 4294901760
    %309 = vmatpush1.msra.mxu0 %v308
    %v310 = vand.u32 %v236, 4294901760
    %311 = vmatprep.subr.mxu0 %v310
    %v312 = vand.u32 %v235, 4294901760
    %313 = vmatpush2.msra.mxu0 %v312
    %v314 = vand.u32 %v234, 4294901760
    %315 = vmatprep.subr.mxu0 %v314
    %v316 = vand.u32 %v233, 4294901760
    %317 = vmatpush2.msra.mxu0 %v316
    %v318 = vand.u32 %v232, 4294901760
    %319 = vmatprep.subr.mxu0 %v318
    %v320 = vand.u32 %v231, 4294901760
    %321 = vmatpush2.msra.mxu0 %v320
    %v322 = vand.u32 %v230, 4294901760
    %323 = vmatprep.subr.mxu0 %v322
    %v324 = vand.u32 %v229, 4294901760
    %325 = vmatpush2.msra.mxu0 %v324
    %v326 = vand.u32 %v228, 4294901760
    %327 = vmatprep.subr.mxu0 %v326
    %v328 = vand.u32 %v227, 4294901760
    %329 = vmatpush2.msra.mxu0 %v328
    %v330 = vand.u32 %v226, 4294901760
    %331 = vmatprep.subr.mxu0 %v330
    %v332 = vand.u32 %v225, 4294901760
    %333 = vmatpush2.msra.mxu0 %v332
    %v334 = vand.u32 %v224, 4294901760
    %335 = vmatprep.subr.mxu0 %v334
    %v336 = vand.u32 %v223, 4294901760
    %337 = vmatpush2.msra.mxu0 %v336
    %v338 = vand.u32 %v222, 4294901760
    %339 = vmatprep.subr.mxu0 %v338
    %v340 = vand.u32 %v221, 4294901760
    %341 = vmatpush2.msra.mxu0 %v340
    %v342 = vand.u32 %v220, 4294901760
    %343 = vmatprep.subr.mxu0 %v342
    %v344 = vand.u32 %v219, 4294901760
    %345 = vmatpush2.msra.mxu0 %v344
    %v346 = vand.u32 %v218, 4294901760
    %347 = vmatprep.subr.mxu0 %v346
    %v348 = vand.u32 %v217, 4294901760
    %349 = vmatpush2.msra.mxu0 %v348
    %v350 = vand.u32 %v216, 4294901760
    %351 = vmatprep.subr.mxu0 %v350
    %v352 = vand.u32 %v215, 4294901760
    %353 = vmatpush2.msra.mxu0 %v352
    %v354 = vand.u32 %v214, 4294901760
    %355 = vmatprep.subr.mxu0 %v354
    %v356 = vand.u32 %v213, 4294901760
    %357 = vmatpush2.msra.mxu0 %v356
    %v358 = vand.u32 %v212, 4294901760
    %359 = vmatprep.subr.mxu0 %v358
    %v360 = vand.u32 %v211, 4294901760
    %361 = vmatpush2.msra.mxu0 %v360
    %v362 = vand.u32 %v210, 4294901760
    %363 = vmatprep.subr.mxu0 %v362
    %v364 = vand.u32 %v209, 4294901760
    %365 = vmatpush2.msra.mxu0 %v364
    %v366 = vand.u32 %v208, 4294901760
    %367 = vmatprep.subr.mxu0 %v366
    %v368 = vand.u32 %v207, 4294901760
    %369 = vmatpush2.msra.mxu0 %v368
    %v370 = vand.u32 %v206, 4294901760
    %371 = vmatprep.subr.mxu0 %v370
    %v372 = vand.u32 %v205, 4294901760
    %373 = vmatpush2.msra.mxu0 %v372
    %v374 = vand.u32 %v243, 4294901760
    %v375 = vsub.f32 %v243, %v374
    %v376 = vand.u32 %v375, 4294901760
    %v377 = vsub.f32 %v375, %v376
    %v378 = vand.u32 %v377, 4294901760
    %379 = vmatprep.mubr.f32.mxu0 %v378
    %v380 = vand.u32 %v242, 4294901760
    %v381 = vsub.f32 %v242, %v380
    %v382 = vand.u32 %v381, 4294901760
    %v383 = vsub.f32 %v381, %v382
    %v384 = vand.u32 %v383, 4294901760
    %385 = vmatmul.mubr.f32.gmra.mxu0 %v384
    %v386 = vpop.f32.mrf.mxu0
    %v387 = vadd.f32 0.0, %v386
    %v388 = vpop.f32.mrf.mxu0
    %v389 = vadd.f32 0.0, %v388
    %390 = vdwg.mxu0
    %v391 = vand.u32 %v204, 4294901760
    %v392 = vsub.f32 %v204, %v391
    %v393 = vand.u32 %v392, 4294901760
    %v394 = vsub.f32 %v392, %v393
    %v395 = vand.u32 %v394, 4294901760
    %396 = vmatprep.subr.mxu0 %v395
    %v397 = vand.u32 %v203, 4294901760
    %v398 = vsub.f32 %v203, %v397
    %v399 = vand.u32 %v398, 4294901760
    %v400 = vsub.f32 %v398, %v399
    %v401 = vand.u32 %v400, 4294901760
    %402 = vmatpush1.msra.mxu0 %v401
    %v403 = vand.u32 %v202, 4294901760
    %v404 = vsub.f32 %v202, %v403
    %v405 = vand.u32 %v404, 4294901760
    %v406 = vsub.f32 %v404, %v405
    %v407 = vand.u32 %v406, 4294901760
    %408 = vmatprep.subr.mxu0 %v407
    %v409 = vand.u32 %v201, 4294901760
    %v410 = vsub.f32 %v201, %v409
    %v411 = vand.u32 %v410, 4294901760
    %v412 = vsub.f32 %v410, %v411
    %v413 = vand.u32 %v412, 4294901760
    %414 = vmatpush1.msra.mxu0 %v413
    %v415 = vand.u32 %v200, 4294901760
    %v416 = vsub.f32 %v200, %v415
    %v417 = vand.u32 %v416, 4294901760
    %v418 = vsub.f32 %v416, %v417
    %v419 = vand.u32 %v418, 4294901760
    %420 = vmatprep.subr.mxu0 %v419
    %v421 = vand.u32 %v199, 4294901760
    %v422 = vsub.f32 %v199, %v421
    %v423 = vand.u32 %v422, 4294901760
    %v424 = vsub.f32 %v422, %v423
    %v425 = vand.u32 %v424, 4294901760
    %426 = vmatpush1.msra.mxu0 %v425
    %v427 = vand.u32 %v198, 4294901760
    %v428 = vsub.f32 %v198, %v427
    %v429 = vand.u32 %v428, 4294901760
    %v430 = vsub.f32 %v428, %v429
    %v431 = vand.u32 %v430, 4294901760
    %432 = vmatprep.subr.mxu0 %v431
    %v433 = vand.u32 %v197, 4294901760
    %v434 = vsub.f32 %v197, %v433
    %v435 = vand.u32 %v434, 4294901760
    %v436 = vsub.f32 %v434, %v435
    %v437 = vand.u32 %v436, 4294901760
    %438 = vmatpush1.msra.mxu0 %v437
    %v439 = vand.u32 %v196, 4294901760
    %v440 = vsub.f32 %v196, %v439
    %v441 = vand.u32 %v440, 4294901760
    %v442 = vsub.f32 %v440, %v441
    %v443 = vand.u32 %v442, 4294901760
    %444 = vmatprep.subr.mxu0 %v443
    %v445 = vand.u32 %v195, 4294901760
    %v446 = vsub.f32 %v195, %v445
    %v447 = vand.u32 %v446, 4294901760
    %v448 = vsub.f32 %v446, %v447
    %v449 = vand.u32 %v448, 4294901760
    %450 = vmatpush1.msra.mxu0 %v449
    %v451 = vand.u32 %v194, 4294901760
    %v452 = vsub.f32 %v194, %v451
    %v453 = vand.u32 %v452, 4294901760
    %v454 = vsub.f32 %v452, %v453
    %v455 = vand.u32 %v454, 4294901760
    %456 = vmatprep.subr.mxu0 %v455
    %v457 = vand.u32 %v193, 4294901760
    %v458 = vsub.f32 %v193, %v457
    %v459 = vand.u32 %v458, 4294901760
    %v460 = vsub.f32 %v458, %v459
    %v461 = vand.u32 %v460, 4294901760
    %462 = vmatpush1.msra.mxu0 %v461
    %v463 = vand.u32 %v192, 4294901760
    %v464 = vsub.f32 %v192, %v463
    %v465 = vand.u32 %v464, 4294901760
    %v466 = vsub.f32 %v464, %v465
    %v467 = vand.u32 %v466, 4294901760
    %468 = vmatprep.subr.mxu0 %v467
    %v469 = vand.u32 %v191, 4294901760
    %v470 = vsub.f32 %v191, %v469
    %v471 = vand.u32 %v470, 4294901760
    %v472 = vsub.f32 %v470, %v471
    %v473 = vand.u32 %v472, 4294901760
    %474 = vmatpush1.msra.mxu0 %v473
    %v475 = vand.u32 %v190, 4294901760
    %v476 = vsub.f32 %v190, %v475
    %v477 = vand.u32 %v476, 4294901760
    %v478 = vsub.f32 %v476, %v477
    %v479 = vand.u32 %v478, 4294901760
    %480 = vmatprep.subr.mxu0 %v479
    %v481 = vand.u32 %v189, 4294901760
    %v482 = vsub.f32 %v189, %v481
    %v483 = vand.u32 %v482, 4294901760
    %v484 = vsub.f32 %v482, %v483
    %v485 = vand.u32 %v484, 4294901760
    %486 = vmatpush1.msra.mxu0 %v485
    %v487 = vand.u32 %v188, 4294901760
    %v488 = vsub.f32 %v188, %v487
    %v489 = vand.u32 %v488, 4294901760
    %v490 = vsub.f32 %v488, %v489
    %v491 = vand.u32 %v490, 4294901760
    %492 = vmatprep.subr.mxu0 %v491
    %v493 = vand.u32 %v187, 4294901760
    %v494 = vsub.f32 %v187, %v493
    %v495 = vand.u32 %v494, 4294901760
    %v496 = vsub.f32 %v494, %v495
    %v497 = vand.u32 %v496, 4294901760
    %498 = vmatpush1.msra.mxu0 %v497
    %v499 = vand.u32 %v186, 4294901760
    %v500 = vsub.f32 %v186, %v499
    %v501 = vand.u32 %v500, 4294901760
    %v502 = vsub.f32 %v500, %v501
    %v503 = vand.u32 %v502, 4294901760
    %504 = vmatprep.subr.mxu0 %v503
    %v505 = vand.u32 %v185, 4294901760
    %v506 = vsub.f32 %v185, %v505
    %v507 = vand.u32 %v506, 4294901760
    %v508 = vsub.f32 %v506, %v507
    %v509 = vand.u32 %v508, 4294901760
    %510 = vmatpush1.msra.mxu0 %v509
    %v511 = vand.u32 %v184, 4294901760
    %v512 = vsub.f32 %v184, %v511
    %v513 = vand.u32 %v512, 4294901760
    %v514 = vsub.f32 %v512, %v513
    %v515 = vand.u32 %v514, 4294901760
    %516 = vmatprep.subr.mxu0 %v515
    %v517 = vand.u32 %v183, 4294901760
    %v518 = vsub.f32 %v183, %v517
    %v519 = vand.u32 %v518, 4294901760
    %v520 = vsub.f32 %v518, %v519
    %v521 = vand.u32 %v520, 4294901760
    %522 = vmatpush1.msra.mxu0 %v521
    %v523 = vand.u32 %v182, 4294901760
    %v524 = vsub.f32 %v182, %v523
    %v525 = vand.u32 %v524, 4294901760
    %v526 = vsub.f32 %v524, %v525
    %v527 = vand.u32 %v526, 4294901760
    %528 = vmatprep.subr.mxu0 %v527
    %v529 = vand.u32 %v181, 4294901760
    %v530 = vsub.f32 %v181, %v529
    %v531 = vand.u32 %v530, 4294901760
    %v532 = vsub.f32 %v530, %v531
    %v533 = vand.u32 %v532, 4294901760
    %534 = vmatpush1.msra.mxu0 %v533
    %v535 = vand.u32 %v180, 4294901760
    %v536 = vsub.f32 %v180, %v535
    %v537 = vand.u32 %v536, 4294901760
    %v538 = vsub.f32 %v536, %v537
    %v539 = vand.u32 %v538, 4294901760
    %540 = vmatprep.subr.mxu0 %v539
    %v541 = vand.u32 %v179, 4294901760
    %v542 = vsub.f32 %v179, %v541
    %v543 = vand.u32 %v542, 4294901760
    %v544 = vsub.f32 %v542, %v543
    %v545 = vand.u32 %v544, 4294901760
    %546 = vmatpush1.msra.mxu0 %v545
    %v547 = vand.u32 %v178, 4294901760
    %v548 = vsub.f32 %v178, %v547
    %v549 = vand.u32 %v548, 4294901760
    %v550 = vsub.f32 %v548, %v549
    %v551 = vand.u32 %v550, 4294901760
    %552 = vmatprep.subr.mxu0 %v551
    %v553 = vand.u32 %v177, 4294901760
    %v554 = vsub.f32 %v177, %v553
    %v555 = vand.u32 %v554, 4294901760
    %v556 = vsub.f32 %v554, %v555
    %v557 = vand.u32 %v556, 4294901760
    %558 = vmatpush1.msra.mxu0 %v557
    %v559 = vand.u32 %v176, 4294901760
    %v560 = vsub.f32 %v176, %v559
    %v561 = vand.u32 %v560, 4294901760
    %v562 = vsub.f32 %v560, %v561
    %v563 = vand.u32 %v562, 4294901760
    %564 = vmatprep.subr.mxu0 %v563
    %v565 = vand.u32 %v175, 4294901760
    %v566 = vsub.f32 %v175, %v565
    %v567 = vand.u32 %v566, 4294901760
    %v568 = vsub.f32 %v566, %v567
    %v569 = vand.u32 %v568, 4294901760
    %570 = vmatpush1.msra.mxu0 %v569
    %v571 = vand.u32 %v174, 4294901760
    %v572 = vsub.f32 %v174, %v571
    %v573 = vand.u32 %v572, 4294901760
    %v574 = vsub.f32 %v572, %v573
    %v575 = vand.u32 %v574, 4294901760
    %576 = vmatprep.subr.mxu0 %v575
    %v577 = vand.u32 %v173, 4294901760
    %v578 = vsub.f32 %v173, %v577
    %v579 = vand.u32 %v578, 4294901760
    %v580 = vsub.f32 %v578, %v579
    %v581 = vand.u32 %v580, 4294901760
    %582 = vmatpush1.msra.mxu0 %v581
    %v583 = vand.u32 %v236, 4294901760
    %v584 = vsub.f32 %v236, %v583
    %v585 = vand.u32 %v584, 4294901760
    %v586 = vsub.f32 %v584, %v585
    %v587 = vand.u32 %v586, 4294901760
    %588 = vmatprep.subr.mxu0 %v587
    %v589 = vand.u32 %v235, 4294901760
    %v590 = vsub.f32 %v235, %v589
    %v591 = vand.u32 %v590, 4294901760
    %v592 = vsub.f32 %v590, %v591
    %v593 = vand.u32 %v592, 4294901760
    %594 = vmatpush2.msra.mxu0 %v593
    %v595 = vand.u32 %v234, 4294901760
    %v596 = vsub.f32 %v234, %v595
    %v597 = vand.u32 %v596, 4294901760
    %v598 = vsub.f32 %v596, %v597
    %v599 = vand.u32 %v598, 4294901760
    %600 = vmatprep.subr.mxu0 %v599
    %v601 = vand.u32 %v233, 4294901760
    %v602 = vsub.f32 %v233, %v601
    %v603 = vand.u32 %v602, 4294901760
    %v604 = vsub.f32 %v602, %v603
    %v605 = vand.u32 %v604, 4294901760
    %606 = vmatpush2.msra.mxu0 %v605
    %v607 = vand.u32 %v232, 4294901760
    %v608 = vsub.f32 %v232, %v607
    %v609 = vand.u32 %v608, 4294901760
    %v610 = vsub.f32 %v608, %v609
    %v611 = vand.u32 %v610, 4294901760
    %612 = vmatprep.subr.mxu0 %v611
    %v613 = vand.u32 %v231, 4294901760
    %v614 = vsub.f32 %v231, %v613
    %v615 = vand.u32 %v614, 4294901760
    %v616 = vsub.f32 %v614, %v615
    %v617 = vand.u32 %v616, 4294901760
    %618 = vmatpush2.msra.mxu0 %v617
    %v619 = vand.u32 %v230, 4294901760
    %v620 = vsub.f32 %v230, %v619
    %v621 = vand.u32 %v620, 4294901760
    %v622 = vsub.f32 %v620, %v621
    %v623 = vand.u32 %v622, 4294901760
    %624 = vmatprep.subr.mxu0 %v623
    %v625 = vand.u32 %v229, 4294901760
    %v626 = vsub.f32 %v229, %v625
    %v627 = vand.u32 %v626, 4294901760
    %v628 = vsub.f32 %v626, %v627
    %v629 = vand.u32 %v628, 4294901760
    %630 = vmatpush2.msra.mxu0 %v629
    %v631 = vand.u32 %v228, 4294901760
    %v632 = vsub.f32 %v228, %v631
    %v633 = vand.u32 %v632, 4294901760
    %v634 = vsub.f32 %v632, %v633
    %v635 = vand.u32 %v634, 4294901760
    %636 = vmatprep.subr.mxu0 %v635
    %v637 = vand.u32 %v227, 4294901760
    %v638 = vsub.f32 %v227, %v637
    %v639 = vand.u32 %v638, 4294901760
    %v640 = vsub.f32 %v638, %v639
    %v641 = vand.u32 %v640, 4294901760
    %642 = vmatpush2.msra.mxu0 %v641
    %v643 = vand.u32 %v226, 4294901760
    %v644 = vsub.f32 %v226, %v643
    %v645 = vand.u32 %v644, 4294901760
    %v646 = vsub.f32 %v644, %v645
    %v647 = vand.u32 %v646, 4294901760
    %648 = vmatprep.subr.mxu0 %v647
    %v649 = vand.u32 %v225, 4294901760
    %v650 = vsub.f32 %v225, %v649
    %v651 = vand.u32 %v650, 4294901760
    %v652 = vsub.f32 %v650, %v651
    %v653 = vand.u32 %v652, 4294901760
    %654 = vmatpush2.msra.mxu0 %v653
    %v655 = vand.u32 %v224, 4294901760
    %v656 = vsub.f32 %v224, %v655
    %v657 = vand.u32 %v656, 4294901760
    %v658 = vsub.f32 %v656, %v657
    %v659 = vand.u32 %v658, 4294901760
    %660 = vmatprep.subr.mxu0 %v659
    %v661 = vand.u32 %v223, 4294901760
    %v662 = vsub.f32 %v223, %v661
    %v663 = vand.u32 %v662, 4294901760
    %v664 = vsub.f32 %v662, %v663
    %v665 = vand.u32 %v664, 4294901760
    %666 = vmatpush2.msra.mxu0 %v665
    %v667 = vand.u32 %v222, 4294901760
    %v668 = vsub.f32 %v222, %v667
    %v669 = vand.u32 %v668, 4294901760
    %v670 = vsub.f32 %v668, %v669
    %v671 = vand.u32 %v670, 4294901760
    %672 = vmatprep.subr.mxu0 %v671
    %v673 = vand.u32 %v221, 4294901760
    %v674 = vsub.f32 %v221, %v673
    %v675 = vand.u32 %v674, 4294901760
    %v676 = vsub.f32 %v674, %v675
    %v677 = vand.u32 %v676, 4294901760
    %678 = vmatpush2.msra.mxu0 %v677
    %v679 = vand.u32 %v220, 4294901760
    %v680 = vsub.f32 %v220, %v679
    %v681 = vand.u32 %v680, 4294901760
    %v682 = vsub.f32 %v680, %v681
    %v683 = vand.u32 %v682, 4294901760
    %684 = vmatprep.subr.mxu0 %v683
    %v685 = vand.u32 %v219, 4294901760
    %v686 = vsub.f32 %v219, %v685
    %v687 = vand.u32 %v686, 4294901760
    %v688 = vsub.f32 %v686, %v687
    %v689 = vand.u32 %v688, 4294901760
    %690 = vmatpush2.msra.mxu0 %v689
    %v691 = vand.u32 %v218, 4294901760
    %v692 = vsub.f32 %v218, %v691
    %v693 = vand.u32 %v692, 4294901760
    %v694 = vsub.f32 %v692, %v693
    %v695 = vand.u32 %v694, 4294901760
    %696 = vmatprep.subr.mxu0 %v695
    %v697 = vand.u32 %v217, 4294901760
    %v698 = vsub.f32 %v217, %v697
    %v699 = vand.u32 %v698, 4294901760
    %v700 = vsub.f32 %v698, %v699
    %v701 = vand.u32 %v700, 4294901760
    %702 = vmatpush2.msra.mxu0 %v701
    %v703 = vand.u32 %v216, 4294901760
    %v704 = vsub.f32 %v216, %v703
    %v705 = vand.u32 %v704, 4294901760
    %v706 = vsub.f32 %v704, %v705
    %v707 = vand.u32 %v706, 4294901760
    %708 = vmatprep.subr.mxu0 %v707
    %v709 = vand.u32 %v215, 4294901760
    %v710 = vsub.f32 %v215, %v709
    %v711 = vand.u32 %v710, 4294901760
    %v712 = vsub.f32 %v710, %v711
    %v713 = vand.u32 %v712, 4294901760
    %714 = vmatpush2.msra.mxu0 %v713
    %v715 = vand.u32 %v214, 4294901760
    %v716 = vsub.f32 %v214, %v715
    %v717 = vand.u32 %v716, 4294901760
    %v718 = vsub.f32 %v716, %v717
    %v719 = vand.u32 %v718, 4294901760
    %720 = vmatprep.subr.mxu0 %v719
    %v721 = vand.u32 %v213, 4294901760
    %v722 = vsub.f32 %v213, %v721
    %v723 = vand.u32 %v722, 4294901760
    %v724 = vsub.f32 %v722, %v723
    %v725 = vand.u32 %v724, 4294901760
    %726 = vmatpush2.msra.mxu0 %v725
    %v727 = vand.u32 %v212, 4294901760
    %v728 = vsub.f32 %v212, %v727
    %v729 = vand.u32 %v728, 4294901760
    %v730 = vsub.f32 %v728, %v729
    %v731 = vand.u32 %v730, 4294901760
    %732 = vmatprep.subr.mxu0 %v731
    %v733 = vand.u32 %v211, 4294901760
    %v734 = vsub.f32 %v211, %v733
    %v735 = vand.u32 %v734, 4294901760
    %v736 = vsub.f32 %v734, %v735
    %v737 = vand.u32 %v736, 4294901760
    %738 = vmatpush2.msra.mxu0 %v737
    %v739 = vand.u32 %v210, 4294901760
    %v740 = vsub.f32 %v210, %v739
    %v741 = vand.u32 %v740, 4294901760
    %v742 = vsub.f32 %v740, %v741
    %v743 = vand.u32 %v742, 4294901760
    %744 = vmatprep.subr.mxu0 %v743
    %v745 = vand.u32 %v209, 4294901760
    %v746 = vsub.f32 %v209, %v745
    %v747 = vand.u32 %v746, 4294901760
    %v748 = vsub.f32 %v746, %v747
    %v749 = vand.u32 %v748, 4294901760
    %750 = vmatpush2.msra.mxu0 %v749
    %v751 = vand.u32 %v208, 4294901760
    %v752 = vsub.f32 %v208, %v751
    %v753 = vand.u32 %v752, 4294901760
    %v754 = vsub.f32 %v752, %v753
    %v755 = vand.u32 %v754, 4294901760
    %756 = vmatprep.subr.mxu0 %v755
    %v757 = vand.u32 %v207, 4294901760
    %v758 = vsub.f32 %v207, %v757
    %v759 = vand.u32 %v758, 4294901760
    %v760 = vsub.f32 %v758, %v759
    %v761 = vand.u32 %v760, 4294901760
    %762 = vmatpush2.msra.mxu0 %v761
    %v763 = vand.u32 %v206, 4294901760
    %v764 = vsub.f32 %v206, %v763
    %v765 = vand.u32 %v764, 4294901760
    %v766 = vsub.f32 %v764, %v765
    %v767 = vand.u32 %v766, 4294901760
    %768 = vmatprep.subr.mxu0 %v767
    %v769 = vand.u32 %v205, 4294901760
    %v770 = vsub.f32 %v205, %v769
    %v771 = vand.u32 %v770, 4294901760
    %v772 = vsub.f32 %v770, %v771
    %v773 = vand.u32 %v772, 4294901760
    %774 = vmatpush2.msra.mxu0 %v773
    %v775 = vand.u32 %v243, 4294901760
    %776 = vmatprep.mubr.f32.mxu0 %v775
    %v777 = vand.u32 %v242, 4294901760
    %778 = vmatmul.mubr.f32.gmra.mxu0 %v777
    %v779 = vpop.f32.mrf.mxu0
    %v780 = vadd.f32 %v387, %v779
    %v781 = vpop.f32.mrf.mxu0
    %v782 = vadd.f32 %v389, %v781
    %783 = vdwg.mxu0
    %v784 = vand.u32 %v204, 4294901760
    %v785 = vsub.f32 %v204, %v784
    %786 = vmatprep.subr.mxu0 %v785
    %v787 = vand.u32 %v203, 4294901760
    %v788 = vsub.f32 %v203, %v787
    %789 = vmatpush1.msra.mxu0 %v788
    %v790 = vand.u32 %v202, 4294901760
    %v791 = vsub.f32 %v202, %v790
    %792 = vmatprep.subr.mxu0 %v791
    %v793 = vand.u32 %v201, 4294901760
    %v794 = vsub.f32 %v201, %v793
    %795 = vmatpush1.msra.mxu0 %v794
    %v796 = vand.u32 %v200, 4294901760
    %v797 = vsub.f32 %v200, %v796
    %798 = vmatprep.subr.mxu0 %v797
    %v799 = vand.u32 %v199, 4294901760
    %v800 = vsub.f32 %v199, %v799
    %801 = vmatpush1.msra.mxu0 %v800
    %v802 = vand.u32 %v198, 4294901760
    %v803 = vsub.f32 %v198, %v802
    %804 = vmatprep.subr.mxu0 %v803
    %v805 = vand.u32 %v197, 4294901760
    %v806 = vsub.f32 %v197, %v805
    %807 = vmatpush1.msra.mxu0 %v806
    %v808 = vand.u32 %v196, 4294901760
    %v809 = vsub.f32 %v196, %v808
    %810 = vmatprep.subr.mxu0 %v809
    %v811 = vand.u32 %v195, 4294901760
    %v812 = vsub.f32 %v195, %v811
    %813 = vmatpush1.msra.mxu0 %v812
    %v814 = vand.u32 %v194, 4294901760
    %v815 = vsub.f32 %v194, %v814
    %816 = vmatprep.subr.mxu0 %v815
    %v817 = vand.u32 %v193, 4294901760
    %v818 = vsub.f32 %v193, %v817
    %819 = vmatpush1.msra.mxu0 %v818
    %v820 = vand.u32 %v192, 4294901760
    %v821 = vsub.f32 %v192, %v820
    %822 = vmatprep.subr.mxu0 %v821
    %v823 = vand.u32 %v191, 4294901760
    %v824 = vsub.f32 %v191, %v823
    %825 = vmatpush1.msra.mxu0 %v824
    %v826 = vand.u32 %v190, 4294901760
    %v827 = vsub.f32 %v190, %v826
    %828 = vmatprep.subr.mxu0 %v827
    %v829 = vand.u32 %v189, 4294901760
    %v830 = vsub.f32 %v189, %v829
    %831 = vmatpush1.msra.mxu0 %v830
    %v832 = vand.u32 %v188, 4294901760
    %v833 = vsub.f32 %v188, %v832
    %834 = vmatprep.subr.mxu0 %v833
    %v835 = vand.u32 %v187, 4294901760
    %v836 = vsub.f32 %v187, %v835
    %837 = vmatpush1.msra.mxu0 %v836
    %v838 = vand.u32 %v186, 4294901760
    %v839 = vsub.f32 %v186, %v838
    %840 = vmatprep.subr.mxu0 %v839
    %v841 = vand.u32 %v185, 4294901760
    %v842 = vsub.f32 %v185, %v841
    %843 = vmatpush1.msra.mxu0 %v842
    %v844 = vand.u32 %v184, 4294901760
    %v845 = vsub.f32 %v184, %v844
    %846 = vmatprep.subr.mxu0 %v845
    %v847 = vand.u32 %v183, 4294901760
    %v848 = vsub.f32 %v183, %v847
    %849 = vmatpush1.msra.mxu0 %v848
    %v850 = vand.u32 %v182, 4294901760
    %v851 = vsub.f32 %v182, %v850
    %852 = vmatprep.subr.mxu0 %v851
    %v853 = vand.u32 %v181, 4294901760
    %v854 = vsub.f32 %v181, %v853
    %855 = vmatpush1.msra.mxu0 %v854
    %v856 = vand.u32 %v180, 4294901760
    %v857 = vsub.f32 %v180, %v856
    %858 = vmatprep.subr.mxu0 %v857
    %v859 = vand.u32 %v179, 4294901760
    %v860 = vsub.f32 %v179, %v859
    %861 = vmatpush1.msra.mxu0 %v860
    %v862 = vand.u32 %v178, 4294901760
    %v863 = vsub.f32 %v178, %v862
    %864 = vmatprep.subr.mxu0 %v863
    %v865 = vand.u32 %v177, 4294901760
    %v866 = vsub.f32 %v177, %v865
    %867 = vmatpush1.msra.mxu0 %v866
    %v868 = vand.u32 %v176, 4294901760
    %v869 = vsub.f32 %v176, %v868
    %870 = vmatprep.subr.mxu0 %v869
    %v871 = vand.u32 %v175, 4294901760
    %v872 = vsub.f32 %v175, %v871
    %873 = vmatpush1.msra.mxu0 %v872
    %v874 = vand.u32 %v174, 4294901760
    %v875 = vsub.f32 %v174, %v874
    %876 = vmatprep.subr.mxu0 %v875
    %v877 = vand.u32 %v173, 4294901760
    %v878 = vsub.f32 %v173, %v877
    %879 = vmatpush1.msra.mxu0 %v878
    %v880 = vand.u32 %v236, 4294901760
    %v881 = vsub.f32 %v236, %v880
    %882 = vmatprep.subr.mxu0 %v881
    %v883 = vand.u32 %v235, 4294901760
    %v884 = vsub.f32 %v235, %v883
    %885 = vmatpush2.msra.mxu0 %v884
    %v886 = vand.u32 %v234, 4294901760
    %v887 = vsub.f32 %v234, %v886
    %888 = vmatprep.subr.mxu0 %v887
    %v889 = vand.u32 %v233, 4294901760
    %v890 = vsub.f32 %v233, %v889
    %891 = vmatpush2.msra.mxu0 %v890
    %v892 = vand.u32 %v232, 4294901760
    %v893 = vsub.f32 %v232, %v892
    %894 = vmatprep.subr.mxu0 %v893
    %v895 = vand.u32 %v231, 4294901760
    %v896 = vsub.f32 %v231, %v895
    %897 = vmatpush2.msra.mxu0 %v896
    %v898 = vand.u32 %v230, 4294901760
    %v899 = vsub.f32 %v230, %v898
    %900 = vmatprep.subr.mxu0 %v899
    %v901 = vand.u32 %v229, 4294901760
    %v902 = vsub.f32 %v229, %v901
    %903 = vmatpush2.msra.mxu0 %v902
    %v904 = vand.u32 %v228, 4294901760
    %v905 = vsub.f32 %v228, %v904
    %906 = vmatprep.subr.mxu0 %v905
    %v907 = vand.u32 %v227, 4294901760
    %v908 = vsub.f32 %v227, %v907
    %909 = vmatpush2.msra.mxu0 %v908
    %v910 = vand.u32 %v226, 4294901760
    %v911 = vsub.f32 %v226, %v910
    %912 = vmatprep.subr.mxu0 %v911
    %v913 = vand.u32 %v225, 4294901760
    %v914 = vsub.f32 %v225, %v913
    %915 = vmatpush2.msra.mxu0 %v914
    %v916 = vand.u32 %v224, 4294901760
    %v917 = vsub.f32 %v224, %v916
    %918 = vmatprep.subr.mxu0 %v917
    %v919 = vand.u32 %v223, 4294901760
    %v920 = vsub.f32 %v223, %v919
    %921 = vmatpush2.msra.mxu0 %v920
    %v922 = vand.u32 %v222, 4294901760
    %v923 = vsub.f32 %v222, %v922
    %924 = vmatprep.subr.mxu0 %v923
    %v925 = vand.u32 %v221, 4294901760
    %v926 = vsub.f32 %v221, %v925
    %927 = vmatpush2.msra.mxu0 %v926
    %v928 = vand.u32 %v220, 4294901760
    %v929 = vsub.f32 %v220, %v928
    %930 = vmatprep.subr.mxu0 %v929
    %v931 = vand.u32 %v219, 4294901760
    %v932 = vsub.f32 %v219, %v931
    %933 = vmatpush2.msra.mxu0 %v932
    %v934 = vand.u32 %v218, 4294901760
    %v935 = vsub.f32 %v218, %v934
    %936 = vmatprep.subr.mxu0 %v935
    %v937 = vand.u32 %v217, 4294901760
    %v938 = vsub.f32 %v217, %v937
    %939 = vmatpush2.msra.mxu0 %v938
    %v940 = vand.u32 %v216, 4294901760
    %v941 = vsub.f32 %v216, %v940
    %942 = vmatprep.subr.mxu0 %v941
    %v943 = vand.u32 %v215, 4294901760
    %v944 = vsub.f32 %v215, %v943
    %945 = vmatpush2.msra.mxu0 %v944
    %v946 = vand.u32 %v214, 4294901760
    %v947 = vsub.f32 %v214, %v946
    %948 = vmatprep.subr.mxu0 %v947
    %v949 = vand.u32 %v213, 4294901760
    %v950 = vsub.f32 %v213, %v949
    %951 = vmatpush2.msra.mxu0 %v950
    %v952 = vand.u32 %v212, 4294901760
    %v953 = vsub.f32 %v212, %v952
    %954 = vmatprep.subr.mxu0 %v953
    %v955 = vand.u32 %v211, 4294901760
    %v956 = vsub.f32 %v211, %v955
    %957 = vmatpush2.msra.mxu0 %v956
    %v958 = vand.u32 %v210, 4294901760
    %v959 = vsub.f32 %v210, %v958
    %960 = vmatprep.subr.mxu0 %v959
    %v961 = vand.u32 %v209, 4294901760
    %v962 = vsub.f32 %v209, %v961
    %963 = vmatpush2.msra.mxu0 %v962
    %v964 = vand.u32 %v208, 4294901760
    %v965 = vsub.f32 %v208, %v964
    %966 = vmatprep.subr.mxu0 %v965
    %v967 = vand.u32 %v207, 4294901760
    %v968 = vsub.f32 %v207, %v967
    %969 = vmatpush2.msra.mxu0 %v968
    %v970 = vand.u32 %v206, 4294901760
    %v971 = vsub.f32 %v206, %v970
    %972 = vmatprep.subr.mxu0 %v971
    %v973 = vand.u32 %v205, 4294901760
    %v974 = vsub.f32 %v205, %v973
    %975 = vmatpush2.msra.mxu0 %v974
    %v976 = vand.u32 %v243, 4294901760
    %v977 = vsub.f32 %v243, %v976
    %978 = vmatprep.mubr.f32.mxu0 %v977
    %v979 = vand.u32 %v242, 4294901760
    %v980 = vsub.f32 %v242, %v979
    %981 = vmatmul.mubr.f32.gmra.mxu0 %v980
    %v982 = vpop.f32.mrf.mxu0
    %v983 = vadd.f32 %v780, %v982
    %v984 = vpop.f32.mrf.mxu0
    %v985 = vadd.f32 %v782, %v984
    %986 = vdwg.mxu0
    %v987 = vand.u32 %v204, 4294901760
    %988 = vmatprep.subr.mxu0 %v987
    %v989 = vand.u32 %v203, 4294901760
    %990 = vmatpush1.msra.mxu0 %v989
    %v991 = vand.u32 %v202, 4294901760
    %992 = vmatprep.subr.mxu0 %v991
    %v993 = vand.u32 %v201, 4294901760
    %994 = vmatpush1.msra.mxu0 %v993
    %v995 = vand.u32 %v200, 4294901760
    %996 = vmatprep.subr.mxu0 %v995
    %v997 = vand.u32 %v199, 4294901760
    %998 = vmatpush1.msra.mxu0 %v997
    %v999 = vand.u32 %v198, 4294901760
    %1000 = vmatprep.subr.mxu0 %v999
    %v1001 = vand.u32 %v197, 4294901760
    %1002 = vmatpush1.msra.mxu0 %v1001
    %v1003 = vand.u32 %v196, 4294901760
    %1004 = vmatprep.subr.mxu0 %v1003
    %v1005 = vand.u32 %v195, 4294901760
    %1006 = vmatpush1.msra.mxu0 %v1005
    %v1007 = vand.u32 %v194, 4294901760
    %1008 = vmatprep.subr.mxu0 %v1007
    %v1009 = vand.u32 %v193, 4294901760
    %1010 = vmatpush1.msra.mxu0 %v1009
    %v1011 = vand.u32 %v192, 4294901760
    %1012 = vmatprep.subr.mxu0 %v1011
    %v1013 = vand.u32 %v191, 4294901760
    %1014 = vmatpush1.msra.mxu0 %v1013
    %v1015 = vand.u32 %v190, 4294901760
    %1016 = vmatprep.subr.mxu0 %v1015
    %v1017 = vand.u32 %v189, 4294901760
    %1018 = vmatpush1.msra.mxu0 %v1017
    %v1019 = vand.u32 %v188, 4294901760
    %1020 = vmatprep.subr.mxu0 %v1019
    %v1021 = vand.u32 %v187, 4294901760
    %1022 = vmatpush1.msra.mxu0 %v1021
    %v1023 = vand.u32 %v186, 4294901760
    %1024 = vmatprep.subr.mxu0 %v1023
    %v1025 = vand.u32 %v185, 4294901760
    %1026 = vmatpush1.msra.mxu0 %v1025
    %v1027 = vand.u32 %v184, 4294901760
    %1028 = vmatprep.subr.mxu0 %v1027
    %v1029 = vand.u32 %v183, 4294901760
    %1030 = vmatpush1.msra.mxu0 %v1029
    %v1031 = vand.u32 %v182, 4294901760
    %1032 = vmatprep.subr.mxu0 %v1031
    %v1033 = vand.u32 %v181, 4294901760
    %1034 = vmatpush1.msra.mxu0 %v1033
    %v1035 = vand.u32 %v180, 4294901760
    %1036 = vmatprep.subr.mxu0 %v1035
    %v1037 = vand.u32 %v179, 4294901760
    %1038 = vmatpush1.msra.mxu0 %v1037
    %v1039 = vand.u32 %v178, 4294901760
    %1040 = vmatprep.subr.mxu0 %v1039
    %v1041 = vand.u32 %v177, 4294901760
    %1042 = vmatpush1.msra.mxu0 %v1041
    %v1043 = vand.u32 %v176, 4294901760
    %1044 = vmatprep.subr.mxu0 %v1043
    %v1045 = vand.u32 %v175, 4294901760
    %1046 = vmatpush1.msra.mxu0 %v1045
    %v1047 = vand.u32 %v174, 4294901760
    %1048 = vmatprep.subr.mxu0 %v1047
    %v1049 = vand.u32 %v173, 4294901760
    %1050 = vmatpush1.msra.mxu0 %v1049
    %v1051 = vand.u32 %v236, 4294901760
    %1052 = vmatprep.subr.mxu0 %v1051
    %v1053 = vand.u32 %v235, 4294901760
    %1054 = vmatpush2.msra.mxu0 %v1053
    %v1055 = vand.u32 %v234, 4294901760
    %1056 = vmatprep.subr.mxu0 %v1055
    %v1057 = vand.u32 %v233, 4294901760
    %1058 = vmatpush2.msra.mxu0 %v1057
    %v1059 = vand.u32 %v232, 4294901760
    %1060 = vmatprep.subr.mxu0 %v1059
    %v1061 = vand.u32 %v231, 4294901760
    %1062 = vmatpush2.msra.mxu0 %v1061
    %v1063 = vand.u32 %v230, 4294901760
    %1064 = vmatprep.subr.mxu0 %v1063
    %v1065 = vand.u32 %v229, 4294901760
    %1066 = vmatpush2.msra.mxu0 %v1065
    %v1067 = vand.u32 %v228, 4294901760
    %1068 = vmatprep.subr.mxu0 %v1067
    %v1069 = vand.u32 %v227, 4294901760
    %1070 = vmatpush2.msra.mxu0 %v1069
    %v1071 = vand.u32 %v226, 4294901760
    %1072 = vmatprep.subr.mxu0 %v1071
    %v1073 = vand.u32 %v225, 4294901760
    %1074 = vmatpush2.msra.mxu0 %v1073
    %v1075 = vand.u32 %v224, 4294901760
    %1076 = vmatprep.subr.mxu0 %v1075
    %v1077 = vand.u32 %v223, 4294901760
    %1078 = vmatpush2.msra.mxu0 %v1077
    %v1079 = vand.u32 %v222, 4294901760
    %1080 = vmatprep.subr.mxu0 %v1079
    %v1081 = vand.u32 %v221, 4294901760
    %1082 = vmatpush2.msra.mxu0 %v1081
    %v1083 = vand.u32 %v220, 4294901760
    %1084 = vmatprep.subr.mxu0 %v1083
    %v1085 = vand.u32 %v219, 4294901760
    %1086 = vmatpush2.msra.mxu0 %v1085
    %v1087 = vand.u32 %v218, 4294901760
    %1088 = vmatprep.subr.mxu0 %v1087
    %v1089 = vand.u32 %v217, 4294901760
    %1090 = vmatpush2.msra.mxu0 %v1089
    %v1091 = vand.u32 %v216, 4294901760
    %1092 = vmatprep.subr.mxu0 %v1091
    %v1093 = vand.u32 %v215, 4294901760
    %1094 = vmatpush2.msra.mxu0 %v1093
    %v1095 = vand.u32 %v214, 4294901760
    %1096 = vmatprep.subr.mxu0 %v1095
    %v1097 = vand.u32 %v213, 4294901760
    %1098 = vmatpush2.msra.mxu0 %v1097
    %v1099 = vand.u32 %v212, 4294901760
    %1100 = vmatprep.subr.mxu0 %v1099
    %v1101 = vand.u32 %v211, 4294901760
    %1102 = vmatpush2.msra.mxu0 %v1101
    %v1103 = vand.u32 %v210, 4294901760
    %1104 = vmatprep.subr.mxu0 %v1103
    %v1105 = vand.u32 %v209, 4294901760
    %1106 = vmatpush2.msra.mxu0 %v1105
    %v1107 = vand.u32 %v208, 4294901760
    %1108 = vmatprep.subr.mxu0 %v1107
    %v1109 = vand.u32 %v207, 4294901760
    %1110 = vmatpush2.msra.mxu0 %v1109
    %v1111 = vand.u32 %v206, 4294901760
    %1112 = vmatprep.subr.mxu0 %v1111
    %v1113 = vand.u32 %v205, 4294901760
    %1114 = vmatpush2.msra.mxu0 %v1113
    %v1115 = vand.u32 %v243, 4294901760
    %v1116 = vsub.f32 %v243, %v1115
    %v1117 = vand.u32 %v1116, 4294901760
    %1118 = vmatprep.mubr.f32.mxu0 %v1117
    %v1119 = vand.u32 %v242, 4294901760
    %v1120 = vsub.f32 %v242, %v1119
    %v1121 = vand.u32 %v1120, 4294901760
    %1122 = vmatmul.mubr.f32.gmra.mxu0 %v1121
    %v1123 = vpop.f32.mrf.mxu0
    %v1124 = vadd.f32 %v983, %v1123
    %v1125 = vpop.f32.mrf.mxu0
    %v1126 = vadd.f32 %v985, %v1125
    %1127 = vdwg.mxu0
    %v1128 = vand.u32 %v204, 4294901760
    %v1129 = vsub.f32 %v204, %v1128
    %v1130 = vand.u32 %v1129, 4294901760
    %1131 = vmatprep.subr.mxu0 %v1130
    %v1132 = vand.u32 %v203, 4294901760
    %v1133 = vsub.f32 %v203, %v1132
    %v1134 = vand.u32 %v1133, 4294901760
    %1135 = vmatpush1.msra.mxu0 %v1134
    %v1136 = vand.u32 %v202, 4294901760
    %v1137 = vsub.f32 %v202, %v1136
    %v1138 = vand.u32 %v1137, 4294901760
    %1139 = vmatprep.subr.mxu0 %v1138
    %v1140 = vand.u32 %v201, 4294901760
    %v1141 = vsub.f32 %v201, %v1140
    %v1142 = vand.u32 %v1141, 4294901760
    %1143 = vmatpush1.msra.mxu0 %v1142
    %v1144 = vand.u32 %v200, 4294901760
    %v1145 = vsub.f32 %v200, %v1144
    %v1146 = vand.u32 %v1145, 4294901760
    %1147 = vmatprep.subr.mxu0 %v1146
    %v1148 = vand.u32 %v199, 4294901760
    %v1149 = vsub.f32 %v199, %v1148
    %v1150 = vand.u32 %v1149, 4294901760
    %1151 = vmatpush1.msra.mxu0 %v1150
    %v1152 = vand.u32 %v198, 4294901760
    %v1153 = vsub.f32 %v198, %v1152
    %v1154 = vand.u32 %v1153, 4294901760
    %1155 = vmatprep.subr.mxu0 %v1154
    %v1156 = vand.u32 %v197, 4294901760
    %v1157 = vsub.f32 %v197, %v1156
    %v1158 = vand.u32 %v1157, 4294901760
    %1159 = vmatpush1.msra.mxu0 %v1158
    %v1160 = vand.u32 %v196, 4294901760
    %v1161 = vsub.f32 %v196, %v1160
    %v1162 = vand.u32 %v1161, 4294901760
    %1163 = vmatprep.subr.mxu0 %v1162
    %v1164 = vand.u32 %v195, 4294901760
    %v1165 = vsub.f32 %v195, %v1164
    %v1166 = vand.u32 %v1165, 4294901760
    %1167 = vmatpush1.msra.mxu0 %v1166
    %v1168 = vand.u32 %v194, 4294901760
    %v1169 = vsub.f32 %v194, %v1168
    %v1170 = vand.u32 %v1169, 4294901760
    %1171 = vmatprep.subr.mxu0 %v1170
    %v1172 = vand.u32 %v193, 4294901760
    %v1173 = vsub.f32 %v193, %v1172
    %v1174 = vand.u32 %v1173, 4294901760
    %1175 = vmatpush1.msra.mxu0 %v1174
    %v1176 = vand.u32 %v192, 4294901760
    %v1177 = vsub.f32 %v192, %v1176
    %v1178 = vand.u32 %v1177, 4294901760
    %1179 = vmatprep.subr.mxu0 %v1178
    %v1180 = vand.u32 %v191, 4294901760
    %v1181 = vsub.f32 %v191, %v1180
    %v1182 = vand.u32 %v1181, 4294901760
    %1183 = vmatpush1.msra.mxu0 %v1182
    %v1184 = vand.u32 %v190, 4294901760
    %v1185 = vsub.f32 %v190, %v1184
    %v1186 = vand.u32 %v1185, 4294901760
    %1187 = vmatprep.subr.mxu0 %v1186
    %v1188 = vand.u32 %v189, 4294901760
    %v1189 = vsub.f32 %v189, %v1188
    %v1190 = vand.u32 %v1189, 4294901760
    %1191 = vmatpush1.msra.mxu0 %v1190
    %v1192 = vand.u32 %v188, 4294901760
    %v1193 = vsub.f32 %v188, %v1192
    %v1194 = vand.u32 %v1193, 4294901760
    %1195 = vmatprep.subr.mxu0 %v1194
    %v1196 = vand.u32 %v187, 4294901760
    %v1197 = vsub.f32 %v187, %v1196
    %v1198 = vand.u32 %v1197, 4294901760
    %1199 = vmatpush1.msra.mxu0 %v1198
    %v1200 = vand.u32 %v186, 4294901760
    %v1201 = vsub.f32 %v186, %v1200
    %v1202 = vand.u32 %v1201, 4294901760
    %1203 = vmatprep.subr.mxu0 %v1202
    %v1204 = vand.u32 %v185, 4294901760
    %v1205 = vsub.f32 %v185, %v1204
    %v1206 = vand.u32 %v1205, 4294901760
    %1207 = vmatpush1.msra.mxu0 %v1206
    %v1208 = vand.u32 %v184, 4294901760
    %v1209 = vsub.f32 %v184, %v1208
    %v1210 = vand.u32 %v1209, 4294901760
    %1211 = vmatprep.subr.mxu0 %v1210
    %v1212 = vand.u32 %v183, 4294901760
    %v1213 = vsub.f32 %v183, %v1212
    %v1214 = vand.u32 %v1213, 4294901760
    %1215 = vmatpush1.msra.mxu0 %v1214
    %v1216 = vand.u32 %v182, 4294901760
    %v1217 = vsub.f32 %v182, %v1216
    %v1218 = vand.u32 %v1217, 4294901760
    %1219 = vmatprep.subr.mxu0 %v1218
    %v1220 = vand.u32 %v181, 4294901760
    %v1221 = vsub.f32 %v181, %v1220
    %v1222 = vand.u32 %v1221, 4294901760
    %1223 = vmatpush1.msra.mxu0 %v1222
    %v1224 = vand.u32 %v180, 4294901760
    %v1225 = vsub.f32 %v180, %v1224
    %v1226 = vand.u32 %v1225, 4294901760
    %1227 = vmatprep.subr.mxu0 %v1226
    %v1228 = vand.u32 %v179, 4294901760
    %v1229 = vsub.f32 %v179, %v1228
    %v1230 = vand.u32 %v1229, 4294901760
    %1231 = vmatpush1.msra.mxu0 %v1230
    %v1232 = vand.u32 %v178, 4294901760
    %v1233 = vsub.f32 %v178, %v1232
    %v1234 = vand.u32 %v1233, 4294901760
    %1235 = vmatprep.subr.mxu0 %v1234
    %v1236 = vand.u32 %v177, 4294901760
    %v1237 = vsub.f32 %v177, %v1236
    %v1238 = vand.u32 %v1237, 4294901760
    %1239 = vmatpush1.msra.mxu0 %v1238
    %v1240 = vand.u32 %v176, 4294901760
    %v1241 = vsub.f32 %v176, %v1240
    %v1242 = vand.u32 %v1241, 4294901760
    %1243 = vmatprep.subr.mxu0 %v1242
    %v1244 = vand.u32 %v175, 4294901760
    %v1245 = vsub.f32 %v175, %v1244
    %v1246 = vand.u32 %v1245, 4294901760
    %1247 = vmatpush1.msra.mxu0 %v1246
    %v1248 = vand.u32 %v174, 4294901760
    %v1249 = vsub.f32 %v174, %v1248
    %v1250 = vand.u32 %v1249, 4294901760
    %1251 = vmatprep.subr.mxu0 %v1250
    %v1252 = vand.u32 %v173, 4294901760
    %v1253 = vsub.f32 %v173, %v1252
    %v1254 = vand.u32 %v1253, 4294901760
    %1255 = vmatpush1.msra.mxu0 %v1254
    %v1256 = vand.u32 %v236, 4294901760
    %v1257 = vsub.f32 %v236, %v1256
    %v1258 = vand.u32 %v1257, 4294901760
    %1259 = vmatprep.subr.mxu0 %v1258
    %v1260 = vand.u32 %v235, 4294901760
    %v1261 = vsub.f32 %v235, %v1260
    %v1262 = vand.u32 %v1261, 4294901760
    %1263 = vmatpush2.msra.mxu0 %v1262
    %v1264 = vand.u32 %v234, 4294901760
    %v1265 = vsub.f32 %v234, %v1264
    %v1266 = vand.u32 %v1265, 4294901760
    %1267 = vmatprep.subr.mxu0 %v1266
    %v1268 = vand.u32 %v233, 4294901760
    %v1269 = vsub.f32 %v233, %v1268
    %v1270 = vand.u32 %v1269, 4294901760
    %1271 = vmatpush2.msra.mxu0 %v1270
    %v1272 = vand.u32 %v232, 4294901760
    %v1273 = vsub.f32 %v232, %v1272
    %v1274 = vand.u32 %v1273, 4294901760
    %1275 = vmatprep.subr.mxu0 %v1274
    %v1276 = vand.u32 %v231, 4294901760
    %v1277 = vsub.f32 %v231, %v1276
    %v1278 = vand.u32 %v1277, 4294901760
    %1279 = vmatpush2.msra.mxu0 %v1278
    %v1280 = vand.u32 %v230, 4294901760
    %v1281 = vsub.f32 %v230, %v1280
    %v1282 = vand.u32 %v1281, 4294901760
    %1283 = vmatprep.subr.mxu0 %v1282
    %v1284 = vand.u32 %v229, 4294901760
    %v1285 = vsub.f32 %v229, %v1284
    %v1286 = vand.u32 %v1285, 4294901760
    %1287 = vmatpush2.msra.mxu0 %v1286
    %v1288 = vand.u32 %v228, 4294901760
    %v1289 = vsub.f32 %v228, %v1288
    %v1290 = vand.u32 %v1289, 4294901760
    %1291 = vmatprep.subr.mxu0 %v1290
    %v1292 = vand.u32 %v227, 4294901760
    %v1293 = vsub.f32 %v227, %v1292
    %v1294 = vand.u32 %v1293, 4294901760
    %1295 = vmatpush2.msra.mxu0 %v1294
    %v1296 = vand.u32 %v226, 4294901760
    %v1297 = vsub.f32 %v226, %v1296
    %v1298 = vand.u32 %v1297, 4294901760
    %1299 = vmatprep.subr.mxu0 %v1298
    %v1300 = vand.u32 %v225, 4294901760
    %v1301 = vsub.f32 %v225, %v1300
    %v1302 = vand.u32 %v1301, 4294901760
    %1303 = vmatpush2.msra.mxu0 %v1302
    %v1304 = vand.u32 %v224, 4294901760
    %v1305 = vsub.f32 %v224, %v1304
    %v1306 = vand.u32 %v1305, 4294901760
    %1307 = vmatprep.subr.mxu0 %v1306
    %v1308 = vand.u32 %v223, 4294901760
    %v1309 = vsub.f32 %v223, %v1308
    %v1310 = vand.u32 %v1309, 4294901760
    %1311 = vmatpush2.msra.mxu0 %v1310
    %v1312 = vand.u32 %v222, 4294901760
    %v1313 = vsub.f32 %v222, %v1312
    %v1314 = vand.u32 %v1313, 4294901760
    %1315 = vmatprep.subr.mxu0 %v1314
    %v1316 = vand.u32 %v221, 4294901760
    %v1317 = vsub.f32 %v221, %v1316
    %v1318 = vand.u32 %v1317, 4294901760
    %1319 = vmatpush2.msra.mxu0 %v1318
    %v1320 = vand.u32 %v220, 4294901760
    %v1321 = vsub.f32 %v220, %v1320
    %v1322 = vand.u32 %v1321, 4294901760
    %1323 = vmatprep.subr.mxu0 %v1322
    %v1324 = vand.u32 %v219, 4294901760
    %v1325 = vsub.f32 %v219, %v1324
    %v1326 = vand.u32 %v1325, 4294901760
    %1327 = vmatpush2.msra.mxu0 %v1326
    %v1328 = vand.u32 %v218, 4294901760
    %v1329 = vsub.f32 %v218, %v1328
    %v1330 = vand.u32 %v1329, 4294901760
    %1331 = vmatprep.subr.mxu0 %v1330
    %v1332 = vand.u32 %v217, 4294901760
    %v1333 = vsub.f32 %v217, %v1332
    %v1334 = vand.u32 %v1333, 4294901760
    %1335 = vmatpush2.msra.mxu0 %v1334
    %v1336 = vand.u32 %v216, 4294901760
    %v1337 = vsub.f32 %v216, %v1336
    %v1338 = vand.u32 %v1337, 4294901760
    %1339 = vmatprep.subr.mxu0 %v1338
    %v1340 = vand.u32 %v215, 4294901760
    %v1341 = vsub.f32 %v215, %v1340
    %v1342 = vand.u32 %v1341, 4294901760
    %1343 = vmatpush2.msra.mxu0 %v1342
    %v1344 = vand.u32 %v214, 4294901760
    %v1345 = vsub.f32 %v214, %v1344
    %v1346 = vand.u32 %v1345, 4294901760
    %1347 = vmatprep.subr.mxu0 %v1346
    %v1348 = vand.u32 %v213, 4294901760
    %v1349 = vsub.f32 %v213, %v1348
    %v1350 = vand.u32 %v1349, 4294901760
    %1351 = vmatpush2.msra.mxu0 %v1350
    %v1352 = vand.u32 %v212, 4294901760
    %v1353 = vsub.f32 %v212, %v1352
    %v1354 = vand.u32 %v1353, 4294901760
    %1355 = vmatprep.subr.mxu0 %v1354
    %v1356 = vand.u32 %v211, 4294901760
    %v1357 = vsub.f32 %v211, %v1356
    %v1358 = vand.u32 %v1357, 4294901760
    %1359 = vmatpush2.msra.mxu0 %v1358
    %v1360 = vand.u32 %v210, 4294901760
    %v1361 = vsub.f32 %v210, %v1360
    %v1362 = vand.u32 %v1361, 4294901760
    %1363 = vmatprep.subr.mxu0 %v1362
    %v1364 = vand.u32 %v209, 4294901760
    %v1365 = vsub.f32 %v209, %v1364
    %v1366 = vand.u32 %v1365, 4294901760
    %1367 = vmatpush2.msra.mxu0 %v1366
    %v1368 = vand.u32 %v208, 4294901760
    %v1369 = vsub.f32 %v208, %v1368
    %v1370 = vand.u32 %v1369, 4294901760
    %1371 = vmatprep.subr.mxu0 %v1370
    %v1372 = vand.u32 %v207, 4294901760
    %v1373 = vsub.f32 %v207, %v1372
    %v1374 = vand.u32 %v1373, 4294901760
    %1375 = vmatpush2.msra.mxu0 %v1374
    %v1376 = vand.u32 %v206, 4294901760
    %v1377 = vsub.f32 %v206, %v1376
    %v1378 = vand.u32 %v1377, 4294901760
    %1379 = vmatprep.subr.mxu0 %v1378
    %v1380 = vand.u32 %v205, 4294901760
    %v1381 = vsub.f32 %v205, %v1380
    %v1382 = vand.u32 %v1381, 4294901760
    %1383 = vmatpush2.msra.mxu0 %v1382
    %v1384 = vand.u32 %v243, 4294901760
    %1385 = vmatprep.mubr.f32.mxu0 %v1384
    %v1386 = vand.u32 %v242, 4294901760
    %1387 = vmatmul.mubr.f32.gmra.mxu0 %v1386
    %v1388 = vpop.f32.mrf.mxu0
    %v1389 = vadd.f32 %v1124, %v1388
    %v1390 = vpop.f32.mrf.mxu0
    %v1391 = vadd.f32 %v1126, %v1390
    %1392 = vdwg.mxu0
    %v1393 = vand.u32 %v204, 4294901760
    %1394 = vmatprep.subr.mxu0 %v1393
    %v1395 = vand.u32 %v203, 4294901760
    %1396 = vmatpush1.msra.mxu0 %v1395
    %v1397 = vand.u32 %v202, 4294901760
    %1398 = vmatprep.subr.mxu0 %v1397
    %v1399 = vand.u32 %v201, 4294901760
    %1400 = vmatpush1.msra.mxu0 %v1399
    %v1401 = vand.u32 %v200, 4294901760
    %1402 = vmatprep.subr.mxu0 %v1401
    %v1403 = vand.u32 %v199, 4294901760
    %1404 = vmatpush1.msra.mxu0 %v1403
    %v1405 = vand.u32 %v198, 4294901760
    %1406 = vmatprep.subr.mxu0 %v1405
    %v1407 = vand.u32 %v197, 4294901760
    %1408 = vmatpush1.msra.mxu0 %v1407
    %v1409 = vand.u32 %v196, 4294901760
    %1410 = vmatprep.subr.mxu0 %v1409
    %v1411 = vand.u32 %v195, 4294901760
    %1412 = vmatpush1.msra.mxu0 %v1411
    %v1413 = vand.u32 %v194, 4294901760
    %1414 = vmatprep.subr.mxu0 %v1413
    %v1415 = vand.u32 %v193, 4294901760
    %1416 = vmatpush1.msra.mxu0 %v1415
    %v1417 = vand.u32 %v192, 4294901760
    %1418 = vmatprep.subr.mxu0 %v1417
    %v1419 = vand.u32 %v191, 4294901760
    %1420 = vmatpush1.msra.mxu0 %v1419
    %v1421 = vand.u32 %v190, 4294901760
    %1422 = vmatprep.subr.mxu0 %v1421
    %v1423 = vand.u32 %v189, 4294901760
    %1424 = vmatpush1.msra.mxu0 %v1423
    %v1425 = vand.u32 %v188, 4294901760
    %1426 = vmatprep.subr.mxu0 %v1425
    %v1427 = vand.u32 %v187, 4294901760
    %1428 = vmatpush1.msra.mxu0 %v1427
    %v1429 = vand.u32 %v186, 4294901760
    %1430 = vmatprep.subr.mxu0 %v1429
    %v1431 = vand.u32 %v185, 4294901760
    %1432 = vmatpush1.msra.mxu0 %v1431
    %v1433 = vand.u32 %v184, 4294901760
    %1434 = vmatprep.subr.mxu0 %v1433
    %v1435 = vand.u32 %v183, 4294901760
    %1436 = vmatpush1.msra.mxu0 %v1435
    %v1437 = vand.u32 %v182, 4294901760
    %1438 = vmatprep.subr.mxu0 %v1437
    %v1439 = vand.u32 %v181, 4294901760
    %1440 = vmatpush1.msra.mxu0 %v1439
    %v1441 = vand.u32 %v180, 4294901760
    %1442 = vmatprep.subr.mxu0 %v1441
    %v1443 = vand.u32 %v179, 4294901760
    %1444 = vmatpush1.msra.mxu0 %v1443
    %v1445 = vand.u32 %v178, 4294901760
    %1446 = vmatprep.subr.mxu0 %v1445
    %v1447 = vand.u32 %v177, 4294901760
    %1448 = vmatpush1.msra.mxu0 %v1447
    %v1449 = vand.u32 %v176, 4294901760
    %1450 = vmatprep.subr.mxu0 %v1449
    %v1451 = vand.u32 %v175, 4294901760
    %1452 = vmatpush1.msra.mxu0 %v1451
    %v1453 = vand.u32 %v174, 4294901760
    %1454 = vmatprep.subr.mxu0 %v1453
    %v1455 = vand.u32 %v173, 4294901760
    %1456 = vmatpush1.msra.mxu0 %v1455
    %v1457 = vand.u32 %v236, 4294901760
    %1458 = vmatprep.subr.mxu0 %v1457
    %v1459 = vand.u32 %v235, 4294901760
    %1460 = vmatpush2.msra.mxu0 %v1459
    %v1461 = vand.u32 %v234, 4294901760
    %1462 = vmatprep.subr.mxu0 %v1461
    %v1463 = vand.u32 %v233, 4294901760
    %1464 = vmatpush2.msra.mxu0 %v1463
    %v1465 = vand.u32 %v232, 4294901760
    %1466 = vmatprep.subr.mxu0 %v1465
    %v1467 = vand.u32 %v231, 4294901760
    %1468 = vmatpush2.msra.mxu0 %v1467
    %v1469 = vand.u32 %v230, 4294901760
    %1470 = vmatprep.subr.mxu0 %v1469
    %v1471 = vand.u32 %v229, 4294901760
    %1472 = vmatpush2.msra.mxu0 %v1471
    %v1473 = vand.u32 %v228, 4294901760
    %1474 = vmatprep.subr.mxu0 %v1473
    %v1475 = vand.u32 %v227, 4294901760
    %1476 = vmatpush2.msra.mxu0 %v1475
    %v1477 = vand.u32 %v226, 4294901760
    %1478 = vmatprep.subr.mxu0 %v1477
    %v1479 = vand.u32 %v225, 4294901760
    %1480 = vmatpush2.msra.mxu0 %v1479
    %v1481 = vand.u32 %v224, 4294901760
    %1482 = vmatprep.subr.mxu0 %v1481
    %v1483 = vand.u32 %v223, 4294901760
    %1484 = vmatpush2.msra.mxu0 %v1483
    %v1485 = vand.u32 %v222, 4294901760
    %1486 = vmatprep.subr.mxu0 %v1485
    %v1487 = vand.u32 %v221, 4294901760
    %1488 = vmatpush2.msra.mxu0 %v1487
    %v1489 = vand.u32 %v220, 4294901760
    %1490 = vmatprep.subr.mxu0 %v1489
    %v1491 = vand.u32 %v219, 4294901760
    %1492 = vmatpush2.msra.mxu0 %v1491
    %v1493 = vand.u32 %v218, 4294901760
    %1494 = vmatprep.subr.mxu0 %v1493
    %v1495 = vand.u32 %v217, 4294901760
    %1496 = vmatpush2.msra.mxu0 %v1495
    %v1497 = vand.u32 %v216, 4294901760
    %1498 = vmatprep.subr.mxu0 %v1497
    %v1499 = vand.u32 %v215, 4294901760
    %1500 = vmatpush2.msra.mxu0 %v1499
    %v1501 = vand.u32 %v214, 4294901760
    %1502 = vmatprep.subr.mxu0 %v1501
    %v1503 = vand.u32 %v213, 4294901760
    %1504 = vmatpush2.msra.mxu0 %v1503
    %v1505 = vand.u32 %v212, 4294901760
    %1506 = vmatprep.subr.mxu0 %v1505
    %v1507 = vand.u32 %v211, 4294901760
    %1508 = vmatpush2.msra.mxu0 %v1507
    %v1509 = vand.u32 %v210, 4294901760
    %1510 = vmatprep.subr.mxu0 %v1509
    %v1511 = vand.u32 %v209, 4294901760
    %1512 = vmatpush2.msra.mxu0 %v1511
    %v1513 = vand.u32 %v208, 4294901760
    %1514 = vmatprep.subr.mxu0 %v1513
    %v1515 = vand.u32 %v207, 4294901760
    %1516 = vmatpush2.msra.mxu0 %v1515
    %v1517 = vand.u32 %v206, 4294901760
    %1518 = vmatprep.subr.mxu0 %v1517
    %v1519 = vand.u32 %v205, 4294901760
    %1520 = vmatpush2.msra.mxu0 %v1519
    %v1521 = vand.u32 %v243, 4294901760
    %1522 = vmatprep.mubr.f32.mxu0 %v1521
    %v1523 = vand.u32 %v242, 4294901760
    %1524 = vmatmul.mubr.f32.gmra.mxu0 %v1523
    %v1525 = vpop.f32.mrf.mxu0
    %v1526 = vadd.f32 %v1389, %v1525
    %v1527 = vpop.f32.mrf.mxu0
    %v1528 = vadd.f32 %v1391, %v1527
    %1529 = vdwg.mxu0
    %v1534 = vsel %vm241, %v73, %v59
    %v1535 = vsel %vm241, %v80, %v66
    %v1538 = vand.u32 %v140, 4294901760
    %1539 = vmatprep.subr.mxu0 %v1538
    %v1540 = vand.u32 %v139, 4294901760
    %1541 = vmatpush1.msra.mxu0 %v1540
    %v1542 = vand.u32 %v138, 4294901760
    %1543 = vmatprep.subr.mxu0 %v1542
    %v1544 = vand.u32 %v137, 4294901760
    %1545 = vmatpush1.msra.mxu0 %v1544
    %v1546 = vand.u32 %v136, 4294901760
    %1547 = vmatprep.subr.mxu0 %v1546
    %v1548 = vand.u32 %v135, 4294901760
    %1549 = vmatpush1.msra.mxu0 %v1548
    %v1550 = vand.u32 %v134, 4294901760
    %1551 = vmatprep.subr.mxu0 %v1550
    %v1552 = vand.u32 %v133, 4294901760
    %1553 = vmatpush1.msra.mxu0 %v1552
    %v1554 = vand.u32 %v132, 4294901760
    %1555 = vmatprep.subr.mxu0 %v1554
    %v1556 = vand.u32 %v131, 4294901760
    %1557 = vmatpush1.msra.mxu0 %v1556
    %v1558 = vand.u32 %v130, 4294901760
    %1559 = vmatprep.subr.mxu0 %v1558
    %v1560 = vand.u32 %v129, 4294901760
    %1561 = vmatpush1.msra.mxu0 %v1560
    %v1562 = vand.u32 %v128, 4294901760
    %1563 = vmatprep.subr.mxu0 %v1562
    %v1564 = vand.u32 %v127, 4294901760
    %1565 = vmatpush1.msra.mxu0 %v1564
    %v1566 = vand.u32 %v126, 4294901760
    %1567 = vmatprep.subr.mxu0 %v1566
    %v1568 = vand.u32 %v125, 4294901760
    %1569 = vmatpush1.msra.mxu0 %v1568
    %v1570 = vand.u32 %v124, 4294901760
    %1571 = vmatprep.subr.mxu0 %v1570
    %v1572 = vand.u32 %v123, 4294901760
    %1573 = vmatpush1.msra.mxu0 %v1572
    %v1574 = vand.u32 %v122, 4294901760
    %1575 = vmatprep.subr.mxu0 %v1574
    %v1576 = vand.u32 %v121, 4294901760
    %1577 = vmatpush1.msra.mxu0 %v1576
    %v1578 = vand.u32 %v120, 4294901760
    %1579 = vmatprep.subr.mxu0 %v1578
    %v1580 = vand.u32 %v119, 4294901760
    %1581 = vmatpush1.msra.mxu0 %v1580
    %v1582 = vand.u32 %v118, 4294901760
    %1583 = vmatprep.subr.mxu0 %v1582
    %v1584 = vand.u32 %v117, 4294901760
    %1585 = vmatpush1.msra.mxu0 %v1584
    %v1586 = vand.u32 %v116, 4294901760
    %1587 = vmatprep.subr.mxu0 %v1586
    %v1588 = vand.u32 %v115, 4294901760
    %1589 = vmatpush1.msra.mxu0 %v1588
    %v1590 = vand.u32 %v114, 4294901760
    %1591 = vmatprep.subr.mxu0 %v1590
    %v1592 = vand.u32 %v113, 4294901760
    %1593 = vmatpush1.msra.mxu0 %v1592
    %v1594 = vand.u32 %v112, 4294901760
    %1595 = vmatprep.subr.mxu0 %v1594
    %v1596 = vand.u32 %v111, 4294901760
    %1597 = vmatpush1.msra.mxu0 %v1596
    %v1598 = vand.u32 %v110, 4294901760
    %1599 = vmatprep.subr.mxu0 %v1598
    %v1600 = vand.u32 %v109, 4294901760
    %1601 = vmatpush1.msra.mxu0 %v1600
    %v1602 = vand.u32 %v172, 4294901760
    %1603 = vmatprep.subr.mxu0 %v1602
    %v1604 = vand.u32 %v171, 4294901760
    %1605 = vmatpush2.msra.mxu0 %v1604
    %v1606 = vand.u32 %v170, 4294901760
    %1607 = vmatprep.subr.mxu0 %v1606
    %v1608 = vand.u32 %v169, 4294901760
    %1609 = vmatpush2.msra.mxu0 %v1608
    %v1610 = vand.u32 %v168, 4294901760
    %1611 = vmatprep.subr.mxu0 %v1610
    %v1612 = vand.u32 %v167, 4294901760
    %1613 = vmatpush2.msra.mxu0 %v1612
    %v1614 = vand.u32 %v166, 4294901760
    %1615 = vmatprep.subr.mxu0 %v1614
    %v1616 = vand.u32 %v165, 4294901760
    %1617 = vmatpush2.msra.mxu0 %v1616
    %v1618 = vand.u32 %v164, 4294901760
    %1619 = vmatprep.subr.mxu0 %v1618
    %v1620 = vand.u32 %v163, 4294901760
    %1621 = vmatpush2.msra.mxu0 %v1620
    %v1622 = vand.u32 %v162, 4294901760
    %1623 = vmatprep.subr.mxu0 %v1622
    %v1624 = vand.u32 %v161, 4294901760
    %1625 = vmatpush2.msra.mxu0 %v1624
    %v1626 = vand.u32 %v160, 4294901760
    %1627 = vmatprep.subr.mxu0 %v1626
    %v1628 = vand.u32 %v159, 4294901760
    %1629 = vmatpush2.msra.mxu0 %v1628
    %v1630 = vand.u32 %v158, 4294901760
    %1631 = vmatprep.subr.mxu0 %v1630
    %v1632 = vand.u32 %v157, 4294901760
    %1633 = vmatpush2.msra.mxu0 %v1632
    %v1634 = vand.u32 %v156, 4294901760
    %1635 = vmatprep.subr.mxu0 %v1634
    %v1636 = vand.u32 %v155, 4294901760
    %1637 = vmatpush2.msra.mxu0 %v1636
    %v1638 = vand.u32 %v154, 4294901760
    %1639 = vmatprep.subr.mxu0 %v1638
    %v1640 = vand.u32 %v153, 4294901760
    %1641 = vmatpush2.msra.mxu0 %v1640
    %v1642 = vand.u32 %v152, 4294901760
    %1643 = vmatprep.subr.mxu0 %v1642
    %v1644 = vand.u32 %v151, 4294901760
    %1645 = vmatpush2.msra.mxu0 %v1644
    %v1646 = vand.u32 %v150, 4294901760
    %1647 = vmatprep.subr.mxu0 %v1646
    %v1648 = vand.u32 %v149, 4294901760
    %1649 = vmatpush2.msra.mxu0 %v1648
    %v1650 = vand.u32 %v148, 4294901760
    %1651 = vmatprep.subr.mxu0 %v1650
    %v1652 = vand.u32 %v147, 4294901760
    %1653 = vmatpush2.msra.mxu0 %v1652
    %v1654 = vand.u32 %v146, 4294901760
    %1655 = vmatprep.subr.mxu0 %v1654
    %v1656 = vand.u32 %v145, 4294901760
    %1657 = vmatpush2.msra.mxu0 %v1656
    %v1658 = vand.u32 %v144, 4294901760
    %1659 = vmatprep.subr.mxu0 %v1658
    %v1660 = vand.u32 %v143, 4294901760
    %1661 = vmatpush2.msra.mxu0 %v1660
    %v1662 = vand.u32 %v142, 4294901760
    %1663 = vmatprep.subr.mxu0 %v1662
    %v1664 = vand.u32 %v141, 4294901760
    %1665 = vmatpush2.msra.mxu0 %v1664
    %v1666 = vand.u32 %v1535, 4294901760
    %v1667 = vsub.f32 %v1535, %v1666
    %v1668 = vand.u32 %v1667, 4294901760
    %v1669 = vsub.f32 %v1667, %v1668
    %v1670 = vand.u32 %v1669, 4294901760
    %1671 = vmatprep.mubr.f32.mxu0 %v1670
    %v1672 = vand.u32 %v1534, 4294901760
    %v1673 = vsub.f32 %v1534, %v1672
    %v1674 = vand.u32 %v1673, 4294901760
    %v1675 = vsub.f32 %v1673, %v1674
    %v1676 = vand.u32 %v1675, 4294901760
    %1677 = vmatmul.mubr.f32.gmra.mxu0 %v1676
    %v1678 = vpop.f32.mrf.mxu0
    %v1679 = vadd.f32 %v1526, %v1678
    %v1680 = vpop.f32.mrf.mxu0
    %v1681 = vadd.f32 %v1528, %v1680
    %1682 = vdwg.mxu0
    %v1683 = vand.u32 %v140, 4294901760
    %v1684 = vsub.f32 %v140, %v1683
    %v1685 = vand.u32 %v1684, 4294901760
    %v1686 = vsub.f32 %v1684, %v1685
    %v1687 = vand.u32 %v1686, 4294901760
    %1688 = vmatprep.subr.mxu0 %v1687
    %v1689 = vand.u32 %v139, 4294901760
    %v1690 = vsub.f32 %v139, %v1689
    %v1691 = vand.u32 %v1690, 4294901760
    %v1692 = vsub.f32 %v1690, %v1691
    %v1693 = vand.u32 %v1692, 4294901760
    %1694 = vmatpush1.msra.mxu0 %v1693
    %v1695 = vand.u32 %v138, 4294901760
    %v1696 = vsub.f32 %v138, %v1695
    %v1697 = vand.u32 %v1696, 4294901760
    %v1698 = vsub.f32 %v1696, %v1697
    %v1699 = vand.u32 %v1698, 4294901760
    %1700 = vmatprep.subr.mxu0 %v1699
    %v1701 = vand.u32 %v137, 4294901760
    %v1702 = vsub.f32 %v137, %v1701
    %v1703 = vand.u32 %v1702, 4294901760
    %v1704 = vsub.f32 %v1702, %v1703
    %v1705 = vand.u32 %v1704, 4294901760
    %1706 = vmatpush1.msra.mxu0 %v1705
    %v1707 = vand.u32 %v136, 4294901760
    %v1708 = vsub.f32 %v136, %v1707
    %v1709 = vand.u32 %v1708, 4294901760
    %v1710 = vsub.f32 %v1708, %v1709
    %v1711 = vand.u32 %v1710, 4294901760
    %1712 = vmatprep.subr.mxu0 %v1711
    %v1713 = vand.u32 %v135, 4294901760
    %v1714 = vsub.f32 %v135, %v1713
    %v1715 = vand.u32 %v1714, 4294901760
    %v1716 = vsub.f32 %v1714, %v1715
    %v1717 = vand.u32 %v1716, 4294901760
    %1718 = vmatpush1.msra.mxu0 %v1717
    %v1719 = vand.u32 %v134, 4294901760
    %v1720 = vsub.f32 %v134, %v1719
    %v1721 = vand.u32 %v1720, 4294901760
    %v1722 = vsub.f32 %v1720, %v1721
    %v1723 = vand.u32 %v1722, 4294901760
    %1724 = vmatprep.subr.mxu0 %v1723
    %v1725 = vand.u32 %v133, 4294901760
    %v1726 = vsub.f32 %v133, %v1725
    %v1727 = vand.u32 %v1726, 4294901760
    %v1728 = vsub.f32 %v1726, %v1727
    %v1729 = vand.u32 %v1728, 4294901760
    %1730 = vmatpush1.msra.mxu0 %v1729
    %v1731 = vand.u32 %v132, 4294901760
    %v1732 = vsub.f32 %v132, %v1731
    %v1733 = vand.u32 %v1732, 4294901760
    %v1734 = vsub.f32 %v1732, %v1733
    %v1735 = vand.u32 %v1734, 4294901760
    %1736 = vmatprep.subr.mxu0 %v1735
    %v1737 = vand.u32 %v131, 4294901760
    %v1738 = vsub.f32 %v131, %v1737
    %v1739 = vand.u32 %v1738, 4294901760
    %v1740 = vsub.f32 %v1738, %v1739
    %v1741 = vand.u32 %v1740, 4294901760
    %1742 = vmatpush1.msra.mxu0 %v1741
    %v1743 = vand.u32 %v130, 4294901760
    %v1744 = vsub.f32 %v130, %v1743
    %v1745 = vand.u32 %v1744, 4294901760
    %v1746 = vsub.f32 %v1744, %v1745
    %v1747 = vand.u32 %v1746, 4294901760
    %1748 = vmatprep.subr.mxu0 %v1747
    %v1749 = vand.u32 %v129, 4294901760
    %v1750 = vsub.f32 %v129, %v1749
    %v1751 = vand.u32 %v1750, 4294901760
    %v1752 = vsub.f32 %v1750, %v1751
    %v1753 = vand.u32 %v1752, 4294901760
    %1754 = vmatpush1.msra.mxu0 %v1753
    %v1755 = vand.u32 %v128, 4294901760
    %v1756 = vsub.f32 %v128, %v1755
    %v1757 = vand.u32 %v1756, 4294901760
    %v1758 = vsub.f32 %v1756, %v1757
    %v1759 = vand.u32 %v1758, 4294901760
    %1760 = vmatprep.subr.mxu0 %v1759
    %v1761 = vand.u32 %v127, 4294901760
    %v1762 = vsub.f32 %v127, %v1761
    %v1763 = vand.u32 %v1762, 4294901760
    %v1764 = vsub.f32 %v1762, %v1763
    %v1765 = vand.u32 %v1764, 4294901760
    %1766 = vmatpush1.msra.mxu0 %v1765
    %v1767 = vand.u32 %v126, 4294901760
    %v1768 = vsub.f32 %v126, %v1767
    %v1769 = vand.u32 %v1768, 4294901760
    %v1770 = vsub.f32 %v1768, %v1769
    %v1771 = vand.u32 %v1770, 4294901760
    %1772 = vmatprep.subr.mxu0 %v1771
    %v1773 = vand.u32 %v125, 4294901760
    %v1774 = vsub.f32 %v125, %v1773
    %v1775 = vand.u32 %v1774, 4294901760
    %v1776 = vsub.f32 %v1774, %v1775
    %v1777 = vand.u32 %v1776, 4294901760
    %1778 = vmatpush1.msra.mxu0 %v1777
    %v1779 = vand.u32 %v124, 4294901760
    %v1780 = vsub.f32 %v124, %v1779
    %v1781 = vand.u32 %v1780, 4294901760
    %v1782 = vsub.f32 %v1780, %v1781
    %v1783 = vand.u32 %v1782, 4294901760
    %1784 = vmatprep.subr.mxu0 %v1783
    %v1785 = vand.u32 %v123, 4294901760
    %v1786 = vsub.f32 %v123, %v1785
    %v1787 = vand.u32 %v1786, 4294901760
    %v1788 = vsub.f32 %v1786, %v1787
    %v1789 = vand.u32 %v1788, 4294901760
    %1790 = vmatpush1.msra.mxu0 %v1789
    %v1791 = vand.u32 %v122, 4294901760
    %v1792 = vsub.f32 %v122, %v1791
    %v1793 = vand.u32 %v1792, 4294901760
    %v1794 = vsub.f32 %v1792, %v1793
    %v1795 = vand.u32 %v1794, 4294901760
    %1796 = vmatprep.subr.mxu0 %v1795
    %v1797 = vand.u32 %v121, 4294901760
    %v1798 = vsub.f32 %v121, %v1797
    %v1799 = vand.u32 %v1798, 4294901760
    %v1800 = vsub.f32 %v1798, %v1799
    %v1801 = vand.u32 %v1800, 4294901760
    %1802 = vmatpush1.msra.mxu0 %v1801
    %v1803 = vand.u32 %v120, 4294901760
    %v1804 = vsub.f32 %v120, %v1803
    %v1805 = vand.u32 %v1804, 4294901760
    %v1806 = vsub.f32 %v1804, %v1805
    %v1807 = vand.u32 %v1806, 4294901760
    %1808 = vmatprep.subr.mxu0 %v1807
    %v1809 = vand.u32 %v119, 4294901760
    %v1810 = vsub.f32 %v119, %v1809
    %v1811 = vand.u32 %v1810, 4294901760
    %v1812 = vsub.f32 %v1810, %v1811
    %v1813 = vand.u32 %v1812, 4294901760
    %1814 = vmatpush1.msra.mxu0 %v1813
    %v1815 = vand.u32 %v118, 4294901760
    %v1816 = vsub.f32 %v118, %v1815
    %v1817 = vand.u32 %v1816, 4294901760
    %v1818 = vsub.f32 %v1816, %v1817
    %v1819 = vand.u32 %v1818, 4294901760
    %1820 = vmatprep.subr.mxu0 %v1819
    %v1821 = vand.u32 %v117, 4294901760
    %v1822 = vsub.f32 %v117, %v1821
    %v1823 = vand.u32 %v1822, 4294901760
    %v1824 = vsub.f32 %v1822, %v1823
    %v1825 = vand.u32 %v1824, 4294901760
    %1826 = vmatpush1.msra.mxu0 %v1825
    %v1827 = vand.u32 %v116, 4294901760
    %v1828 = vsub.f32 %v116, %v1827
    %v1829 = vand.u32 %v1828, 4294901760
    %v1830 = vsub.f32 %v1828, %v1829
    %v1831 = vand.u32 %v1830, 4294901760
    %1832 = vmatprep.subr.mxu0 %v1831
    %v1833 = vand.u32 %v115, 4294901760
    %v1834 = vsub.f32 %v115, %v1833
    %v1835 = vand.u32 %v1834, 4294901760
    %v1836 = vsub.f32 %v1834, %v1835
    %v1837 = vand.u32 %v1836, 4294901760
    %1838 = vmatpush1.msra.mxu0 %v1837
    %v1839 = vand.u32 %v114, 4294901760
    %v1840 = vsub.f32 %v114, %v1839
    %v1841 = vand.u32 %v1840, 4294901760
    %v1842 = vsub.f32 %v1840, %v1841
    %v1843 = vand.u32 %v1842, 4294901760
    %1844 = vmatprep.subr.mxu0 %v1843
    %v1845 = vand.u32 %v113, 4294901760
    %v1846 = vsub.f32 %v113, %v1845
    %v1847 = vand.u32 %v1846, 4294901760
    %v1848 = vsub.f32 %v1846, %v1847
    %v1849 = vand.u32 %v1848, 4294901760
    %1850 = vmatpush1.msra.mxu0 %v1849
    %v1851 = vand.u32 %v112, 4294901760
    %v1852 = vsub.f32 %v112, %v1851
    %v1853 = vand.u32 %v1852, 4294901760
    %v1854 = vsub.f32 %v1852, %v1853
    %v1855 = vand.u32 %v1854, 4294901760
    %1856 = vmatprep.subr.mxu0 %v1855
    %v1857 = vand.u32 %v111, 4294901760
    %v1858 = vsub.f32 %v111, %v1857
    %v1859 = vand.u32 %v1858, 4294901760
    %v1860 = vsub.f32 %v1858, %v1859
    %v1861 = vand.u32 %v1860, 4294901760
    %1862 = vmatpush1.msra.mxu0 %v1861
    %v1863 = vand.u32 %v110, 4294901760
    %v1864 = vsub.f32 %v110, %v1863
    %v1865 = vand.u32 %v1864, 4294901760
    %v1866 = vsub.f32 %v1864, %v1865
    %v1867 = vand.u32 %v1866, 4294901760
    %1868 = vmatprep.subr.mxu0 %v1867
    %v1869 = vand.u32 %v109, 4294901760
    %v1870 = vsub.f32 %v109, %v1869
    %v1871 = vand.u32 %v1870, 4294901760
    %v1872 = vsub.f32 %v1870, %v1871
    %v1873 = vand.u32 %v1872, 4294901760
    %1874 = vmatpush1.msra.mxu0 %v1873
    %v1875 = vand.u32 %v172, 4294901760
    %v1876 = vsub.f32 %v172, %v1875
    %v1877 = vand.u32 %v1876, 4294901760
    %v1878 = vsub.f32 %v1876, %v1877
    %v1879 = vand.u32 %v1878, 4294901760
    %1880 = vmatprep.subr.mxu0 %v1879
    %v1881 = vand.u32 %v171, 4294901760
    %v1882 = vsub.f32 %v171, %v1881
    %v1883 = vand.u32 %v1882, 4294901760
    %v1884 = vsub.f32 %v1882, %v1883
    %v1885 = vand.u32 %v1884, 4294901760
    %1886 = vmatpush2.msra.mxu0 %v1885
    %v1887 = vand.u32 %v170, 4294901760
    %v1888 = vsub.f32 %v170, %v1887
    %v1889 = vand.u32 %v1888, 4294901760
    %v1890 = vsub.f32 %v1888, %v1889
    %v1891 = vand.u32 %v1890, 4294901760
    %1892 = vmatprep.subr.mxu0 %v1891
    %v1893 = vand.u32 %v169, 4294901760
    %v1894 = vsub.f32 %v169, %v1893
    %v1895 = vand.u32 %v1894, 4294901760
    %v1896 = vsub.f32 %v1894, %v1895
    %v1897 = vand.u32 %v1896, 4294901760
    %1898 = vmatpush2.msra.mxu0 %v1897
    %v1899 = vand.u32 %v168, 4294901760
    %v1900 = vsub.f32 %v168, %v1899
    %v1901 = vand.u32 %v1900, 4294901760
    %v1902 = vsub.f32 %v1900, %v1901
    %v1903 = vand.u32 %v1902, 4294901760
    %1904 = vmatprep.subr.mxu0 %v1903
    %v1905 = vand.u32 %v167, 4294901760
    %v1906 = vsub.f32 %v167, %v1905
    %v1907 = vand.u32 %v1906, 4294901760
    %v1908 = vsub.f32 %v1906, %v1907
    %v1909 = vand.u32 %v1908, 4294901760
    %1910 = vmatpush2.msra.mxu0 %v1909
    %v1911 = vand.u32 %v166, 4294901760
    %v1912 = vsub.f32 %v166, %v1911
    %v1913 = vand.u32 %v1912, 4294901760
    %v1914 = vsub.f32 %v1912, %v1913
    %v1915 = vand.u32 %v1914, 4294901760
    %1916 = vmatprep.subr.mxu0 %v1915
    %v1917 = vand.u32 %v165, 4294901760
    %v1918 = vsub.f32 %v165, %v1917
    %v1919 = vand.u32 %v1918, 4294901760
    %v1920 = vsub.f32 %v1918, %v1919
    %v1921 = vand.u32 %v1920, 4294901760
    %1922 = vmatpush2.msra.mxu0 %v1921
    %v1923 = vand.u32 %v164, 4294901760
    %v1924 = vsub.f32 %v164, %v1923
    %v1925 = vand.u32 %v1924, 4294901760
    %v1926 = vsub.f32 %v1924, %v1925
    %v1927 = vand.u32 %v1926, 4294901760
    %1928 = vmatprep.subr.mxu0 %v1927
    %v1929 = vand.u32 %v163, 4294901760
    %v1930 = vsub.f32 %v163, %v1929
    %v1931 = vand.u32 %v1930, 4294901760
    %v1932 = vsub.f32 %v1930, %v1931
    %v1933 = vand.u32 %v1932, 4294901760
    %1934 = vmatpush2.msra.mxu0 %v1933
    %v1935 = vand.u32 %v162, 4294901760
    %v1936 = vsub.f32 %v162, %v1935
    %v1937 = vand.u32 %v1936, 4294901760
    %v1938 = vsub.f32 %v1936, %v1937
    %v1939 = vand.u32 %v1938, 4294901760
    %1940 = vmatprep.subr.mxu0 %v1939
    %v1941 = vand.u32 %v161, 4294901760
    %v1942 = vsub.f32 %v161, %v1941
    %v1943 = vand.u32 %v1942, 4294901760
    %v1944 = vsub.f32 %v1942, %v1943
    %v1945 = vand.u32 %v1944, 4294901760
    %1946 = vmatpush2.msra.mxu0 %v1945
    %v1947 = vand.u32 %v160, 4294901760
    %v1948 = vsub.f32 %v160, %v1947
    %v1949 = vand.u32 %v1948, 4294901760
    %v1950 = vsub.f32 %v1948, %v1949
    %v1951 = vand.u32 %v1950, 4294901760
    %1952 = vmatprep.subr.mxu0 %v1951
    %v1953 = vand.u32 %v159, 4294901760
    %v1954 = vsub.f32 %v159, %v1953
    %v1955 = vand.u32 %v1954, 4294901760
    %v1956 = vsub.f32 %v1954, %v1955
    %v1957 = vand.u32 %v1956, 4294901760
    %1958 = vmatpush2.msra.mxu0 %v1957
    %v1959 = vand.u32 %v158, 4294901760
    %v1960 = vsub.f32 %v158, %v1959
    %v1961 = vand.u32 %v1960, 4294901760
    %v1962 = vsub.f32 %v1960, %v1961
    %v1963 = vand.u32 %v1962, 4294901760
    %1964 = vmatprep.subr.mxu0 %v1963
    %v1965 = vand.u32 %v157, 4294901760
    %v1966 = vsub.f32 %v157, %v1965
    %v1967 = vand.u32 %v1966, 4294901760
    %v1968 = vsub.f32 %v1966, %v1967
    %v1969 = vand.u32 %v1968, 4294901760
    %1970 = vmatpush2.msra.mxu0 %v1969
    %v1971 = vand.u32 %v156, 4294901760
    %v1972 = vsub.f32 %v156, %v1971
    %v1973 = vand.u32 %v1972, 4294901760
    %v1974 = vsub.f32 %v1972, %v1973
    %v1975 = vand.u32 %v1974, 4294901760
    %1976 = vmatprep.subr.mxu0 %v1975
    %v1977 = vand.u32 %v155, 4294901760
    %v1978 = vsub.f32 %v155, %v1977
    %v1979 = vand.u32 %v1978, 4294901760
    %v1980 = vsub.f32 %v1978, %v1979
    %v1981 = vand.u32 %v1980, 4294901760
    %1982 = vmatpush2.msra.mxu0 %v1981
    %v1983 = vand.u32 %v154, 4294901760
    %v1984 = vsub.f32 %v154, %v1983
    %v1985 = vand.u32 %v1984, 4294901760
    %v1986 = vsub.f32 %v1984, %v1985
    %v1987 = vand.u32 %v1986, 4294901760
    %1988 = vmatprep.subr.mxu0 %v1987
    %v1989 = vand.u32 %v153, 4294901760
    %v1990 = vsub.f32 %v153, %v1989
    %v1991 = vand.u32 %v1990, 4294901760
    %v1992 = vsub.f32 %v1990, %v1991
    %v1993 = vand.u32 %v1992, 4294901760
    %1994 = vmatpush2.msra.mxu0 %v1993
    %v1995 = vand.u32 %v152, 4294901760
    %v1996 = vsub.f32 %v152, %v1995
    %v1997 = vand.u32 %v1996, 4294901760
    %v1998 = vsub.f32 %v1996, %v1997
    %v1999 = vand.u32 %v1998, 4294901760
    %2000 = vmatprep.subr.mxu0 %v1999
    %v2001 = vand.u32 %v151, 4294901760
    %v2002 = vsub.f32 %v151, %v2001
    %v2003 = vand.u32 %v2002, 4294901760
    %v2004 = vsub.f32 %v2002, %v2003
    %v2005 = vand.u32 %v2004, 4294901760
    %2006 = vmatpush2.msra.mxu0 %v2005
    %v2007 = vand.u32 %v150, 4294901760
    %v2008 = vsub.f32 %v150, %v2007
    %v2009 = vand.u32 %v2008, 4294901760
    %v2010 = vsub.f32 %v2008, %v2009
    %v2011 = vand.u32 %v2010, 4294901760
    %2012 = vmatprep.subr.mxu0 %v2011
    %v2013 = vand.u32 %v149, 4294901760
    %v2014 = vsub.f32 %v149, %v2013
    %v2015 = vand.u32 %v2014, 4294901760
    %v2016 = vsub.f32 %v2014, %v2015
    %v2017 = vand.u32 %v2016, 4294901760
    %2018 = vmatpush2.msra.mxu0 %v2017
    %v2019 = vand.u32 %v148, 4294901760
    %v2020 = vsub.f32 %v148, %v2019
    %v2021 = vand.u32 %v2020, 4294901760
    %v2022 = vsub.f32 %v2020, %v2021
    %v2023 = vand.u32 %v2022, 4294901760
    %2024 = vmatprep.subr.mxu0 %v2023
    %v2025 = vand.u32 %v147, 4294901760
    %v2026 = vsub.f32 %v147, %v2025
    %v2027 = vand.u32 %v2026, 4294901760
    %v2028 = vsub.f32 %v2026, %v2027
    %v2029 = vand.u32 %v2028, 4294901760
    %2030 = vmatpush2.msra.mxu0 %v2029
    %v2031 = vand.u32 %v146, 4294901760
    %v2032 = vsub.f32 %v146, %v2031
    %v2033 = vand.u32 %v2032, 4294901760
    %v2034 = vsub.f32 %v2032, %v2033
    %v2035 = vand.u32 %v2034, 4294901760
    %2036 = vmatprep.subr.mxu0 %v2035
    %v2037 = vand.u32 %v145, 4294901760
    %v2038 = vsub.f32 %v145, %v2037
    %v2039 = vand.u32 %v2038, 4294901760
    %v2040 = vsub.f32 %v2038, %v2039
    %v2041 = vand.u32 %v2040, 4294901760
    %2042 = vmatpush2.msra.mxu0 %v2041
    %v2043 = vand.u32 %v144, 4294901760
    %v2044 = vsub.f32 %v144, %v2043
    %v2045 = vand.u32 %v2044, 4294901760
    %v2046 = vsub.f32 %v2044, %v2045
    %v2047 = vand.u32 %v2046, 4294901760
    %2048 = vmatprep.subr.mxu0 %v2047
    %v2049 = vand.u32 %v143, 4294901760
    %v2050 = vsub.f32 %v143, %v2049
    %v2051 = vand.u32 %v2050, 4294901760
    %v2052 = vsub.f32 %v2050, %v2051
    %v2053 = vand.u32 %v2052, 4294901760
    %2054 = vmatpush2.msra.mxu0 %v2053
    %v2055 = vand.u32 %v142, 4294901760
    %v2056 = vsub.f32 %v142, %v2055
    %v2057 = vand.u32 %v2056, 4294901760
    %v2058 = vsub.f32 %v2056, %v2057
    %v2059 = vand.u32 %v2058, 4294901760
    %2060 = vmatprep.subr.mxu0 %v2059
    %v2061 = vand.u32 %v141, 4294901760
    %v2062 = vsub.f32 %v141, %v2061
    %v2063 = vand.u32 %v2062, 4294901760
    %v2064 = vsub.f32 %v2062, %v2063
    %v2065 = vand.u32 %v2064, 4294901760
    %2066 = vmatpush2.msra.mxu0 %v2065
    %v2067 = vand.u32 %v1535, 4294901760
    %2068 = vmatprep.mubr.f32.mxu0 %v2067
    %v2069 = vand.u32 %v1534, 4294901760
    %2070 = vmatmul.mubr.f32.gmra.mxu0 %v2069
    %v2071 = vpop.f32.mrf.mxu0
    %v2072 = vadd.f32 %v1679, %v2071
    %v2073 = vpop.f32.mrf.mxu0
    %v2074 = vadd.f32 %v1681, %v2073
    %2075 = vdwg.mxu0
    %v2076 = vand.u32 %v140, 4294901760
    %v2077 = vsub.f32 %v140, %v2076
    %2078 = vmatprep.subr.mxu0 %v2077
    %v2079 = vand.u32 %v139, 4294901760
    %v2080 = vsub.f32 %v139, %v2079
    %2081 = vmatpush1.msra.mxu0 %v2080
    %v2082 = vand.u32 %v138, 4294901760
    %v2083 = vsub.f32 %v138, %v2082
    %2084 = vmatprep.subr.mxu0 %v2083
    %v2085 = vand.u32 %v137, 4294901760
    %v2086 = vsub.f32 %v137, %v2085
    %2087 = vmatpush1.msra.mxu0 %v2086
    %v2088 = vand.u32 %v136, 4294901760
    %v2089 = vsub.f32 %v136, %v2088
    %2090 = vmatprep.subr.mxu0 %v2089
    %v2091 = vand.u32 %v135, 4294901760
    %v2092 = vsub.f32 %v135, %v2091
    %2093 = vmatpush1.msra.mxu0 %v2092
    %v2094 = vand.u32 %v134, 4294901760
    %v2095 = vsub.f32 %v134, %v2094
    %2096 = vmatprep.subr.mxu0 %v2095
    %v2097 = vand.u32 %v133, 4294901760
    %v2098 = vsub.f32 %v133, %v2097
    %2099 = vmatpush1.msra.mxu0 %v2098
    %v2100 = vand.u32 %v132, 4294901760
    %v2101 = vsub.f32 %v132, %v2100
    %2102 = vmatprep.subr.mxu0 %v2101
    %v2103 = vand.u32 %v131, 4294901760
    %v2104 = vsub.f32 %v131, %v2103
    %2105 = vmatpush1.msra.mxu0 %v2104
    %v2106 = vand.u32 %v130, 4294901760
    %v2107 = vsub.f32 %v130, %v2106
    %2108 = vmatprep.subr.mxu0 %v2107
    %v2109 = vand.u32 %v129, 4294901760
    %v2110 = vsub.f32 %v129, %v2109
    %2111 = vmatpush1.msra.mxu0 %v2110
    %v2112 = vand.u32 %v128, 4294901760
    %v2113 = vsub.f32 %v128, %v2112
    %2114 = vmatprep.subr.mxu0 %v2113
    %v2115 = vand.u32 %v127, 4294901760
    %v2116 = vsub.f32 %v127, %v2115
    %2117 = vmatpush1.msra.mxu0 %v2116
    %v2118 = vand.u32 %v126, 4294901760
    %v2119 = vsub.f32 %v126, %v2118
    %2120 = vmatprep.subr.mxu0 %v2119
    %v2121 = vand.u32 %v125, 4294901760
    %v2122 = vsub.f32 %v125, %v2121
    %2123 = vmatpush1.msra.mxu0 %v2122
    %v2124 = vand.u32 %v124, 4294901760
    %v2125 = vsub.f32 %v124, %v2124
    %2126 = vmatprep.subr.mxu0 %v2125
    %v2127 = vand.u32 %v123, 4294901760
    %v2128 = vsub.f32 %v123, %v2127
    %2129 = vmatpush1.msra.mxu0 %v2128
    %v2130 = vand.u32 %v122, 4294901760
    %v2131 = vsub.f32 %v122, %v2130
    %2132 = vmatprep.subr.mxu0 %v2131
    %v2133 = vand.u32 %v121, 4294901760
    %v2134 = vsub.f32 %v121, %v2133
    %2135 = vmatpush1.msra.mxu0 %v2134
    %v2136 = vand.u32 %v120, 4294901760
    %v2137 = vsub.f32 %v120, %v2136
    %2138 = vmatprep.subr.mxu0 %v2137
    %v2139 = vand.u32 %v119, 4294901760
    %v2140 = vsub.f32 %v119, %v2139
    %2141 = vmatpush1.msra.mxu0 %v2140
    %v2142 = vand.u32 %v118, 4294901760
    %v2143 = vsub.f32 %v118, %v2142
    %2144 = vmatprep.subr.mxu0 %v2143
    %v2145 = vand.u32 %v117, 4294901760
    %v2146 = vsub.f32 %v117, %v2145
    %2147 = vmatpush1.msra.mxu0 %v2146
    %v2148 = vand.u32 %v116, 4294901760
    %v2149 = vsub.f32 %v116, %v2148
    %2150 = vmatprep.subr.mxu0 %v2149
    %v2151 = vand.u32 %v115, 4294901760
    %v2152 = vsub.f32 %v115, %v2151
    %2153 = vmatpush1.msra.mxu0 %v2152
    %v2154 = vand.u32 %v114, 4294901760
    %v2155 = vsub.f32 %v114, %v2154
    %2156 = vmatprep.subr.mxu0 %v2155
    %v2157 = vand.u32 %v113, 4294901760
    %v2158 = vsub.f32 %v113, %v2157
    %2159 = vmatpush1.msra.mxu0 %v2158
    %v2160 = vand.u32 %v112, 4294901760
    %v2161 = vsub.f32 %v112, %v2160
    %2162 = vmatprep.subr.mxu0 %v2161
    %v2163 = vand.u32 %v111, 4294901760
    %v2164 = vsub.f32 %v111, %v2163
    %2165 = vmatpush1.msra.mxu0 %v2164
    %v2166 = vand.u32 %v110, 4294901760
    %v2167 = vsub.f32 %v110, %v2166
    %2168 = vmatprep.subr.mxu0 %v2167
    %v2169 = vand.u32 %v109, 4294901760
    %v2170 = vsub.f32 %v109, %v2169
    %2171 = vmatpush1.msra.mxu0 %v2170
    %v2172 = vand.u32 %v172, 4294901760
    %v2173 = vsub.f32 %v172, %v2172
    %2174 = vmatprep.subr.mxu0 %v2173
    %v2175 = vand.u32 %v171, 4294901760
    %v2176 = vsub.f32 %v171, %v2175
    %2177 = vmatpush2.msra.mxu0 %v2176
    %v2178 = vand.u32 %v170, 4294901760
    %v2179 = vsub.f32 %v170, %v2178
    %2180 = vmatprep.subr.mxu0 %v2179
    %v2181 = vand.u32 %v169, 4294901760
    %v2182 = vsub.f32 %v169, %v2181
    %2183 = vmatpush2.msra.mxu0 %v2182
    %v2184 = vand.u32 %v168, 4294901760
    %v2185 = vsub.f32 %v168, %v2184
    %2186 = vmatprep.subr.mxu0 %v2185
    %v2187 = vand.u32 %v167, 4294901760
    %v2188 = vsub.f32 %v167, %v2187
    %2189 = vmatpush2.msra.mxu0 %v2188
    %v2190 = vand.u32 %v166, 4294901760
    %v2191 = vsub.f32 %v166, %v2190
    %2192 = vmatprep.subr.mxu0 %v2191
    %v2193 = vand.u32 %v165, 4294901760
    %v2194 = vsub.f32 %v165, %v2193
    %2195 = vmatpush2.msra.mxu0 %v2194
    %v2196 = vand.u32 %v164, 4294901760
    %v2197 = vsub.f32 %v164, %v2196
    %2198 = vmatprep.subr.mxu0 %v2197
    %v2199 = vand.u32 %v163, 4294901760
    %v2200 = vsub.f32 %v163, %v2199
    %2201 = vmatpush2.msra.mxu0 %v2200
    %v2202 = vand.u32 %v162, 4294901760
    %v2203 = vsub.f32 %v162, %v2202
    %2204 = vmatprep.subr.mxu0 %v2203
    %v2205 = vand.u32 %v161, 4294901760
    %v2206 = vsub.f32 %v161, %v2205
    %2207 = vmatpush2.msra.mxu0 %v2206
    %v2208 = vand.u32 %v160, 4294901760
    %v2209 = vsub.f32 %v160, %v2208
    %2210 = vmatprep.subr.mxu0 %v2209
    %v2211 = vand.u32 %v159, 4294901760
    %v2212 = vsub.f32 %v159, %v2211
    %2213 = vmatpush2.msra.mxu0 %v2212
    %v2214 = vand.u32 %v158, 4294901760
    %v2215 = vsub.f32 %v158, %v2214
    %2216 = vmatprep.subr.mxu0 %v2215
    %v2217 = vand.u32 %v157, 4294901760
    %v2218 = vsub.f32 %v157, %v2217
    %2219 = vmatpush2.msra.mxu0 %v2218
    %v2220 = vand.u32 %v156, 4294901760
    %v2221 = vsub.f32 %v156, %v2220
    %2222 = vmatprep.subr.mxu0 %v2221
    %v2223 = vand.u32 %v155, 4294901760
    %v2224 = vsub.f32 %v155, %v2223
    %2225 = vmatpush2.msra.mxu0 %v2224
    %v2226 = vand.u32 %v154, 4294901760
    %v2227 = vsub.f32 %v154, %v2226
    %2228 = vmatprep.subr.mxu0 %v2227
    %v2229 = vand.u32 %v153, 4294901760
    %v2230 = vsub.f32 %v153, %v2229
    %2231 = vmatpush2.msra.mxu0 %v2230
    %v2232 = vand.u32 %v152, 4294901760
    %v2233 = vsub.f32 %v152, %v2232
    %2234 = vmatprep.subr.mxu0 %v2233
    %v2235 = vand.u32 %v151, 4294901760
    %v2236 = vsub.f32 %v151, %v2235
    %2237 = vmatpush2.msra.mxu0 %v2236
    %v2238 = vand.u32 %v150, 4294901760
    %v2239 = vsub.f32 %v150, %v2238
    %2240 = vmatprep.subr.mxu0 %v2239
    %v2241 = vand.u32 %v149, 4294901760
    %v2242 = vsub.f32 %v149, %v2241
    %2243 = vmatpush2.msra.mxu0 %v2242
    %v2244 = vand.u32 %v148, 4294901760
    %v2245 = vsub.f32 %v148, %v2244
    %2246 = vmatprep.subr.mxu0 %v2245
    %v2247 = vand.u32 %v147, 4294901760
    %v2248 = vsub.f32 %v147, %v2247
    %2249 = vmatpush2.msra.mxu0 %v2248
    %v2250 = vand.u32 %v146, 4294901760
    %v2251 = vsub.f32 %v146, %v2250
    %2252 = vmatprep.subr.mxu0 %v2251
    %v2253 = vand.u32 %v145, 4294901760
    %v2254 = vsub.f32 %v145, %v2253
    %2255 = vmatpush2.msra.mxu0 %v2254
    %v2256 = vand.u32 %v144, 4294901760
    %v2257 = vsub.f32 %v144, %v2256
    %2258 = vmatprep.subr.mxu0 %v2257
    %v2259 = vand.u32 %v143, 4294901760
    %v2260 = vsub.f32 %v143, %v2259
    %2261 = vmatpush2.msra.mxu0 %v2260
    %v2262 = vand.u32 %v142, 4294901760
    %v2263 = vsub.f32 %v142, %v2262
    %2264 = vmatprep.subr.mxu0 %v2263
    %v2265 = vand.u32 %v141, 4294901760
    %v2266 = vsub.f32 %v141, %v2265
    %2267 = vmatpush2.msra.mxu0 %v2266
    %v2268 = vand.u32 %v1535, 4294901760
    %v2269 = vsub.f32 %v1535, %v2268
    %2270 = vmatprep.mubr.f32.mxu0 %v2269
    %v2271 = vand.u32 %v1534, 4294901760
    %v2272 = vsub.f32 %v1534, %v2271
    %2273 = vmatmul.mubr.f32.gmra.mxu0 %v2272
    %v2274 = vpop.f32.mrf.mxu0
    %v2275 = vadd.f32 %v2072, %v2274
    %v2276 = vpop.f32.mrf.mxu0
    %v2277 = vadd.f32 %v2074, %v2276
    %2278 = vdwg.mxu0
    %v2279 = vand.u32 %v140, 4294901760
    %2280 = vmatprep.subr.mxu0 %v2279
    %v2281 = vand.u32 %v139, 4294901760
    %2282 = vmatpush1.msra.mxu0 %v2281
    %v2283 = vand.u32 %v138, 4294901760
    %2284 = vmatprep.subr.mxu0 %v2283
    %v2285 = vand.u32 %v137, 4294901760
    %2286 = vmatpush1.msra.mxu0 %v2285
    %v2287 = vand.u32 %v136, 4294901760
    %2288 = vmatprep.subr.mxu0 %v2287
    %v2289 = vand.u32 %v135, 4294901760
    %2290 = vmatpush1.msra.mxu0 %v2289
    %v2291 = vand.u32 %v134, 4294901760
    %2292 = vmatprep.subr.mxu0 %v2291
    %v2293 = vand.u32 %v133, 4294901760
    %2294 = vmatpush1.msra.mxu0 %v2293
    %v2295 = vand.u32 %v132, 4294901760
    %2296 = vmatprep.subr.mxu0 %v2295
    %v2297 = vand.u32 %v131, 4294901760
    %2298 = vmatpush1.msra.mxu0 %v2297
    %v2299 = vand.u32 %v130, 4294901760
    %2300 = vmatprep.subr.mxu0 %v2299
    %v2301 = vand.u32 %v129, 4294901760
    %2302 = vmatpush1.msra.mxu0 %v2301
    %v2303 = vand.u32 %v128, 4294901760
    %2304 = vmatprep.subr.mxu0 %v2303
    %v2305 = vand.u32 %v127, 4294901760
    %2306 = vmatpush1.msra.mxu0 %v2305
    %v2307 = vand.u32 %v126, 4294901760
    %2308 = vmatprep.subr.mxu0 %v2307
    %v2309 = vand.u32 %v125, 4294901760
    %2310 = vmatpush1.msra.mxu0 %v2309
    %v2311 = vand.u32 %v124, 4294901760
    %2312 = vmatprep.subr.mxu0 %v2311
    %v2313 = vand.u32 %v123, 4294901760
    %2314 = vmatpush1.msra.mxu0 %v2313
    %v2315 = vand.u32 %v122, 4294901760
    %2316 = vmatprep.subr.mxu0 %v2315
    %v2317 = vand.u32 %v121, 4294901760
    %2318 = vmatpush1.msra.mxu0 %v2317
    %v2319 = vand.u32 %v120, 4294901760
    %2320 = vmatprep.subr.mxu0 %v2319
    %v2321 = vand.u32 %v119, 4294901760
    %2322 = vmatpush1.msra.mxu0 %v2321
    %v2323 = vand.u32 %v118, 4294901760
    %2324 = vmatprep.subr.mxu0 %v2323
    %v2325 = vand.u32 %v117, 4294901760
    %2326 = vmatpush1.msra.mxu0 %v2325
    %v2327 = vand.u32 %v116, 4294901760
    %2328 = vmatprep.subr.mxu0 %v2327
    %v2329 = vand.u32 %v115, 4294901760
    %2330 = vmatpush1.msra.mxu0 %v2329
    %v2331 = vand.u32 %v114, 4294901760
    %2332 = vmatprep.subr.mxu0 %v2331
    %v2333 = vand.u32 %v113, 4294901760
    %2334 = vmatpush1.msra.mxu0 %v2333
    %v2335 = vand.u32 %v112, 4294901760
    %2336 = vmatprep.subr.mxu0 %v2335
    %v2337 = vand.u32 %v111, 4294901760
    %2338 = vmatpush1.msra.mxu0 %v2337
    %v2339 = vand.u32 %v110, 4294901760
    %2340 = vmatprep.subr.mxu0 %v2339
    %v2341 = vand.u32 %v109, 4294901760
    %2342 = vmatpush1.msra.mxu0 %v2341
    %v2343 = vand.u32 %v172, 4294901760
    %2344 = vmatprep.subr.mxu0 %v2343
    %v2345 = vand.u32 %v171, 4294901760
    %2346 = vmatpush2.msra.mxu0 %v2345
    %v2347 = vand.u32 %v170, 4294901760
    %2348 = vmatprep.subr.mxu0 %v2347
    %v2349 = vand.u32 %v169, 4294901760
    %2350 = vmatpush2.msra.mxu0 %v2349
    %v2351 = vand.u32 %v168, 4294901760
    %2352 = vmatprep.subr.mxu0 %v2351
    %v2353 = vand.u32 %v167, 4294901760
    %2354 = vmatpush2.msra.mxu0 %v2353
    %v2355 = vand.u32 %v166, 4294901760
    %2356 = vmatprep.subr.mxu0 %v2355
    %v2357 = vand.u32 %v165, 4294901760
    %2358 = vmatpush2.msra.mxu0 %v2357
    %v2359 = vand.u32 %v164, 4294901760
    %2360 = vmatprep.subr.mxu0 %v2359
    %v2361 = vand.u32 %v163, 4294901760
    %2362 = vmatpush2.msra.mxu0 %v2361
    %v2363 = vand.u32 %v162, 4294901760
    %2364 = vmatprep.subr.mxu0 %v2363
    %v2365 = vand.u32 %v161, 4294901760
    %2366 = vmatpush2.msra.mxu0 %v2365
    %v2367 = vand.u32 %v160, 4294901760
    %2368 = vmatprep.subr.mxu0 %v2367
    %v2369 = vand.u32 %v159, 4294901760
    %2370 = vmatpush2.msra.mxu0 %v2369
    %v2371 = vand.u32 %v158, 4294901760
    %2372 = vmatprep.subr.mxu0 %v2371
    %v2373 = vand.u32 %v157, 4294901760
    %2374 = vmatpush2.msra.mxu0 %v2373
    %v2375 = vand.u32 %v156, 4294901760
    %2376 = vmatprep.subr.mxu0 %v2375
    %v2377 = vand.u32 %v155, 4294901760
    %2378 = vmatpush2.msra.mxu0 %v2377
    %v2379 = vand.u32 %v154, 4294901760
    %2380 = vmatprep.subr.mxu0 %v2379
    %v2381 = vand.u32 %v153, 4294901760
    %2382 = vmatpush2.msra.mxu0 %v2381
    %v2383 = vand.u32 %v152, 4294901760
    %2384 = vmatprep.subr.mxu0 %v2383
    %v2385 = vand.u32 %v151, 4294901760
    %2386 = vmatpush2.msra.mxu0 %v2385
    %v2387 = vand.u32 %v150, 4294901760
    %2388 = vmatprep.subr.mxu0 %v2387
    %v2389 = vand.u32 %v149, 4294901760
    %2390 = vmatpush2.msra.mxu0 %v2389
    %v2391 = vand.u32 %v148, 4294901760
    %2392 = vmatprep.subr.mxu0 %v2391
    %v2393 = vand.u32 %v147, 4294901760
    %2394 = vmatpush2.msra.mxu0 %v2393
    %v2395 = vand.u32 %v146, 4294901760
    %2396 = vmatprep.subr.mxu0 %v2395
    %v2397 = vand.u32 %v145, 4294901760
    %2398 = vmatpush2.msra.mxu0 %v2397
    %v2399 = vand.u32 %v144, 4294901760
    %2400 = vmatprep.subr.mxu0 %v2399
    %v2401 = vand.u32 %v143, 4294901760
    %2402 = vmatpush2.msra.mxu0 %v2401
    %v2403 = vand.u32 %v142, 4294901760
    %2404 = vmatprep.subr.mxu0 %v2403
    %v2405 = vand.u32 %v141, 4294901760
    %2406 = vmatpush2.msra.mxu0 %v2405
    %v2407 = vand.u32 %v1535, 4294901760
    %v2408 = vsub.f32 %v1535, %v2407
    %v2409 = vand.u32 %v2408, 4294901760
    %2410 = vmatprep.mubr.f32.mxu0 %v2409
    %v2411 = vand.u32 %v1534, 4294901760
    %v2412 = vsub.f32 %v1534, %v2411
    %v2413 = vand.u32 %v2412, 4294901760
    %2414 = vmatmul.mubr.f32.gmra.mxu0 %v2413
    %v2415 = vpop.f32.mrf.mxu0
    %v2416 = vadd.f32 %v2275, %v2415
    %v2417 = vpop.f32.mrf.mxu0
    %v2418 = vadd.f32 %v2277, %v2417
    %2419 = vdwg.mxu0
    %v2420 = vand.u32 %v140, 4294901760
    %v2421 = vsub.f32 %v140, %v2420
    %v2422 = vand.u32 %v2421, 4294901760
    %2423 = vmatprep.subr.mxu0 %v2422
    %v2424 = vand.u32 %v139, 4294901760
    %v2425 = vsub.f32 %v139, %v2424
    %v2426 = vand.u32 %v2425, 4294901760
    %2427 = vmatpush1.msra.mxu0 %v2426
    %v2428 = vand.u32 %v138, 4294901760
    %v2429 = vsub.f32 %v138, %v2428
    %v2430 = vand.u32 %v2429, 4294901760
    %2431 = vmatprep.subr.mxu0 %v2430
    %v2432 = vand.u32 %v137, 4294901760
    %v2433 = vsub.f32 %v137, %v2432
    %v2434 = vand.u32 %v2433, 4294901760
    %2435 = vmatpush1.msra.mxu0 %v2434
    %v2436 = vand.u32 %v136, 4294901760
    %v2437 = vsub.f32 %v136, %v2436
    %v2438 = vand.u32 %v2437, 4294901760
    %2439 = vmatprep.subr.mxu0 %v2438
    %v2440 = vand.u32 %v135, 4294901760
    %v2441 = vsub.f32 %v135, %v2440
    %v2442 = vand.u32 %v2441, 4294901760
    %2443 = vmatpush1.msra.mxu0 %v2442
    %v2444 = vand.u32 %v134, 4294901760
    %v2445 = vsub.f32 %v134, %v2444
    %v2446 = vand.u32 %v2445, 4294901760
    %2447 = vmatprep.subr.mxu0 %v2446
    %v2448 = vand.u32 %v133, 4294901760
    %v2449 = vsub.f32 %v133, %v2448
    %v2450 = vand.u32 %v2449, 4294901760
    %2451 = vmatpush1.msra.mxu0 %v2450
    %v2452 = vand.u32 %v132, 4294901760
    %v2453 = vsub.f32 %v132, %v2452
    %v2454 = vand.u32 %v2453, 4294901760
    %2455 = vmatprep.subr.mxu0 %v2454
    %v2456 = vand.u32 %v131, 4294901760
    %v2457 = vsub.f32 %v131, %v2456
    %v2458 = vand.u32 %v2457, 4294901760
    %2459 = vmatpush1.msra.mxu0 %v2458
    %v2460 = vand.u32 %v130, 4294901760
    %v2461 = vsub.f32 %v130, %v2460
    %v2462 = vand.u32 %v2461, 4294901760
    %2463 = vmatprep.subr.mxu0 %v2462
    %v2464 = vand.u32 %v129, 4294901760
    %v2465 = vsub.f32 %v129, %v2464
    %v2466 = vand.u32 %v2465, 4294901760
    %2467 = vmatpush1.msra.mxu0 %v2466
    %v2468 = vand.u32 %v128, 4294901760
    %v2469 = vsub.f32 %v128, %v2468
    %v2470 = vand.u32 %v2469, 4294901760
    %2471 = vmatprep.subr.mxu0 %v2470
    %v2472 = vand.u32 %v127, 4294901760
    %v2473 = vsub.f32 %v127, %v2472
    %v2474 = vand.u32 %v2473, 4294901760
    %2475 = vmatpush1.msra.mxu0 %v2474
    %v2476 = vand.u32 %v126, 4294901760
    %v2477 = vsub.f32 %v126, %v2476
    %v2478 = vand.u32 %v2477, 4294901760
    %2479 = vmatprep.subr.mxu0 %v2478
    %v2480 = vand.u32 %v125, 4294901760
    %v2481 = vsub.f32 %v125, %v2480
    %v2482 = vand.u32 %v2481, 4294901760
    %2483 = vmatpush1.msra.mxu0 %v2482
    %v2484 = vand.u32 %v124, 4294901760
    %v2485 = vsub.f32 %v124, %v2484
    %v2486 = vand.u32 %v2485, 4294901760
    %2487 = vmatprep.subr.mxu0 %v2486
    %v2488 = vand.u32 %v123, 4294901760
    %v2489 = vsub.f32 %v123, %v2488
    %v2490 = vand.u32 %v2489, 4294901760
    %2491 = vmatpush1.msra.mxu0 %v2490
    %v2492 = vand.u32 %v122, 4294901760
    %v2493 = vsub.f32 %v122, %v2492
    %v2494 = vand.u32 %v2493, 4294901760
    %2495 = vmatprep.subr.mxu0 %v2494
    %v2496 = vand.u32 %v121, 4294901760
    %v2497 = vsub.f32 %v121, %v2496
    %v2498 = vand.u32 %v2497, 4294901760
    %2499 = vmatpush1.msra.mxu0 %v2498
    %v2500 = vand.u32 %v120, 4294901760
    %v2501 = vsub.f32 %v120, %v2500
    %v2502 = vand.u32 %v2501, 4294901760
    %2503 = vmatprep.subr.mxu0 %v2502
    %v2504 = vand.u32 %v119, 4294901760
    %v2505 = vsub.f32 %v119, %v2504
    %v2506 = vand.u32 %v2505, 4294901760
    %2507 = vmatpush1.msra.mxu0 %v2506
    %v2508 = vand.u32 %v118, 4294901760
    %v2509 = vsub.f32 %v118, %v2508
    %v2510 = vand.u32 %v2509, 4294901760
    %2511 = vmatprep.subr.mxu0 %v2510
    %v2512 = vand.u32 %v117, 4294901760
    %v2513 = vsub.f32 %v117, %v2512
    %v2514 = vand.u32 %v2513, 4294901760
    %2515 = vmatpush1.msra.mxu0 %v2514
    %v2516 = vand.u32 %v116, 4294901760
    %v2517 = vsub.f32 %v116, %v2516
    %v2518 = vand.u32 %v2517, 4294901760
    %2519 = vmatprep.subr.mxu0 %v2518
    %v2520 = vand.u32 %v115, 4294901760
    %v2521 = vsub.f32 %v115, %v2520
    %v2522 = vand.u32 %v2521, 4294901760
    %2523 = vmatpush1.msra.mxu0 %v2522
    %v2524 = vand.u32 %v114, 4294901760
    %v2525 = vsub.f32 %v114, %v2524
    %v2526 = vand.u32 %v2525, 4294901760
    %2527 = vmatprep.subr.mxu0 %v2526
    %v2528 = vand.u32 %v113, 4294901760
    %v2529 = vsub.f32 %v113, %v2528
    %v2530 = vand.u32 %v2529, 4294901760
    %2531 = vmatpush1.msra.mxu0 %v2530
    %v2532 = vand.u32 %v112, 4294901760
    %v2533 = vsub.f32 %v112, %v2532
    %v2534 = vand.u32 %v2533, 4294901760
    %2535 = vmatprep.subr.mxu0 %v2534
    %v2536 = vand.u32 %v111, 4294901760
    %v2537 = vsub.f32 %v111, %v2536
    %v2538 = vand.u32 %v2537, 4294901760
    %2539 = vmatpush1.msra.mxu0 %v2538
    %v2540 = vand.u32 %v110, 4294901760
    %v2541 = vsub.f32 %v110, %v2540
    %v2542 = vand.u32 %v2541, 4294901760
    %2543 = vmatprep.subr.mxu0 %v2542
    %v2544 = vand.u32 %v109, 4294901760
    %v2545 = vsub.f32 %v109, %v2544
    %v2546 = vand.u32 %v2545, 4294901760
    %2547 = vmatpush1.msra.mxu0 %v2546
    %v2548 = vand.u32 %v172, 4294901760
    %v2549 = vsub.f32 %v172, %v2548
    %v2550 = vand.u32 %v2549, 4294901760
    %2551 = vmatprep.subr.mxu0 %v2550
    %v2552 = vand.u32 %v171, 4294901760
    %v2553 = vsub.f32 %v171, %v2552
    %v2554 = vand.u32 %v2553, 4294901760
    %2555 = vmatpush2.msra.mxu0 %v2554
    %v2556 = vand.u32 %v170, 4294901760
    %v2557 = vsub.f32 %v170, %v2556
    %v2558 = vand.u32 %v2557, 4294901760
    %2559 = vmatprep.subr.mxu0 %v2558
    %v2560 = vand.u32 %v169, 4294901760
    %v2561 = vsub.f32 %v169, %v2560
    %v2562 = vand.u32 %v2561, 4294901760
    %2563 = vmatpush2.msra.mxu0 %v2562
    %v2564 = vand.u32 %v168, 4294901760
    %v2565 = vsub.f32 %v168, %v2564
    %v2566 = vand.u32 %v2565, 4294901760
    %2567 = vmatprep.subr.mxu0 %v2566
    %v2568 = vand.u32 %v167, 4294901760
    %v2569 = vsub.f32 %v167, %v2568
    %v2570 = vand.u32 %v2569, 4294901760
    %2571 = vmatpush2.msra.mxu0 %v2570
    %v2572 = vand.u32 %v166, 4294901760
    %v2573 = vsub.f32 %v166, %v2572
    %v2574 = vand.u32 %v2573, 4294901760
    %2575 = vmatprep.subr.mxu0 %v2574
    %v2576 = vand.u32 %v165, 4294901760
    %v2577 = vsub.f32 %v165, %v2576
    %v2578 = vand.u32 %v2577, 4294901760
    %2579 = vmatpush2.msra.mxu0 %v2578
    %v2580 = vand.u32 %v164, 4294901760
    %v2581 = vsub.f32 %v164, %v2580
    %v2582 = vand.u32 %v2581, 4294901760
    %2583 = vmatprep.subr.mxu0 %v2582
    %v2584 = vand.u32 %v163, 4294901760
    %v2585 = vsub.f32 %v163, %v2584
    %v2586 = vand.u32 %v2585, 4294901760
    %2587 = vmatpush2.msra.mxu0 %v2586
    %v2588 = vand.u32 %v162, 4294901760
    %v2589 = vsub.f32 %v162, %v2588
    %v2590 = vand.u32 %v2589, 4294901760
    %2591 = vmatprep.subr.mxu0 %v2590
    %v2592 = vand.u32 %v161, 4294901760
    %v2593 = vsub.f32 %v161, %v2592
    %v2594 = vand.u32 %v2593, 4294901760
    %2595 = vmatpush2.msra.mxu0 %v2594
    %v2596 = vand.u32 %v160, 4294901760
    %v2597 = vsub.f32 %v160, %v2596
    %v2598 = vand.u32 %v2597, 4294901760
    %2599 = vmatprep.subr.mxu0 %v2598
    %v2600 = vand.u32 %v159, 4294901760
    %v2601 = vsub.f32 %v159, %v2600
    %v2602 = vand.u32 %v2601, 4294901760
    %2603 = vmatpush2.msra.mxu0 %v2602
    %v2604 = vand.u32 %v158, 4294901760
    %v2605 = vsub.f32 %v158, %v2604
    %v2606 = vand.u32 %v2605, 4294901760
    %2607 = vmatprep.subr.mxu0 %v2606
    %v2608 = vand.u32 %v157, 4294901760
    %v2609 = vsub.f32 %v157, %v2608
    %v2610 = vand.u32 %v2609, 4294901760
    %2611 = vmatpush2.msra.mxu0 %v2610
    %v2612 = vand.u32 %v156, 4294901760
    %v2613 = vsub.f32 %v156, %v2612
    %v2614 = vand.u32 %v2613, 4294901760
    %2615 = vmatprep.subr.mxu0 %v2614
    %v2616 = vand.u32 %v155, 4294901760
    %v2617 = vsub.f32 %v155, %v2616
    %v2618 = vand.u32 %v2617, 4294901760
    %2619 = vmatpush2.msra.mxu0 %v2618
    %v2620 = vand.u32 %v154, 4294901760
    %v2621 = vsub.f32 %v154, %v2620
    %v2622 = vand.u32 %v2621, 4294901760
    %2623 = vmatprep.subr.mxu0 %v2622
    %v2624 = vand.u32 %v153, 4294901760
    %v2625 = vsub.f32 %v153, %v2624
    %v2626 = vand.u32 %v2625, 4294901760
    %2627 = vmatpush2.msra.mxu0 %v2626
    %v2628 = vand.u32 %v152, 4294901760
    %v2629 = vsub.f32 %v152, %v2628
    %v2630 = vand.u32 %v2629, 4294901760
    %2631 = vmatprep.subr.mxu0 %v2630
    %v2632 = vand.u32 %v151, 4294901760
    %v2633 = vsub.f32 %v151, %v2632
    %v2634 = vand.u32 %v2633, 4294901760
    %2635 = vmatpush2.msra.mxu0 %v2634
    %v2636 = vand.u32 %v150, 4294901760
    %v2637 = vsub.f32 %v150, %v2636
    %v2638 = vand.u32 %v2637, 4294901760
    %2639 = vmatprep.subr.mxu0 %v2638
    %v2640 = vand.u32 %v149, 4294901760
    %v2641 = vsub.f32 %v149, %v2640
    %v2642 = vand.u32 %v2641, 4294901760
    %2643 = vmatpush2.msra.mxu0 %v2642
    %v2644 = vand.u32 %v148, 4294901760
    %v2645 = vsub.f32 %v148, %v2644
    %v2646 = vand.u32 %v2645, 4294901760
    %2647 = vmatprep.subr.mxu0 %v2646
    %v2648 = vand.u32 %v147, 4294901760
    %v2649 = vsub.f32 %v147, %v2648
    %v2650 = vand.u32 %v2649, 4294901760
    %2651 = vmatpush2.msra.mxu0 %v2650
    %v2652 = vand.u32 %v146, 4294901760
    %v2653 = vsub.f32 %v146, %v2652
    %v2654 = vand.u32 %v2653, 4294901760
    %2655 = vmatprep.subr.mxu0 %v2654
    %v2656 = vand.u32 %v145, 4294901760
    %v2657 = vsub.f32 %v145, %v2656
    %v2658 = vand.u32 %v2657, 4294901760
    %2659 = vmatpush2.msra.mxu0 %v2658
    %v2660 = vand.u32 %v144, 4294901760
    %v2661 = vsub.f32 %v144, %v2660
    %v2662 = vand.u32 %v2661, 4294901760
    %2663 = vmatprep.subr.mxu0 %v2662
    %v2664 = vand.u32 %v143, 4294901760
    %v2665 = vsub.f32 %v143, %v2664
    %v2666 = vand.u32 %v2665, 4294901760
    %2667 = vmatpush2.msra.mxu0 %v2666
    %v2668 = vand.u32 %v142, 4294901760
    %v2669 = vsub.f32 %v142, %v2668
    %v2670 = vand.u32 %v2669, 4294901760
    %2671 = vmatprep.subr.mxu0 %v2670
    %v2672 = vand.u32 %v141, 4294901760
    %v2673 = vsub.f32 %v141, %v2672
    %v2674 = vand.u32 %v2673, 4294901760
    %2675 = vmatpush2.msra.mxu0 %v2674
    %v2676 = vand.u32 %v1535, 4294901760
    %2677 = vmatprep.mubr.f32.mxu0 %v2676
    %v2678 = vand.u32 %v1534, 4294901760
    %2679 = vmatmul.mubr.f32.gmra.mxu0 %v2678
    %v2680 = vpop.f32.mrf.mxu0
    %v2681 = vadd.f32 %v2416, %v2680
    %v2682 = vpop.f32.mrf.mxu0
    %v2683 = vadd.f32 %v2418, %v2682
    %2684 = vdwg.mxu0
    %v2685 = vand.u32 %v140, 4294901760
    %2686 = vmatprep.subr.mxu0 %v2685
    %v2687 = vand.u32 %v139, 4294901760
    %2688 = vmatpush1.msra.mxu0 %v2687
    %v2689 = vand.u32 %v138, 4294901760
    %2690 = vmatprep.subr.mxu0 %v2689
    %v2691 = vand.u32 %v137, 4294901760
    %2692 = vmatpush1.msra.mxu0 %v2691
    %v2693 = vand.u32 %v136, 4294901760
    %2694 = vmatprep.subr.mxu0 %v2693
    %v2695 = vand.u32 %v135, 4294901760
    %2696 = vmatpush1.msra.mxu0 %v2695
    %v2697 = vand.u32 %v134, 4294901760
    %2698 = vmatprep.subr.mxu0 %v2697
    %v2699 = vand.u32 %v133, 4294901760
    %2700 = vmatpush1.msra.mxu0 %v2699
    %v2701 = vand.u32 %v132, 4294901760
    %2702 = vmatprep.subr.mxu0 %v2701
    %v2703 = vand.u32 %v131, 4294901760
    %2704 = vmatpush1.msra.mxu0 %v2703
    %v2705 = vand.u32 %v130, 4294901760
    %2706 = vmatprep.subr.mxu0 %v2705
    %v2707 = vand.u32 %v129, 4294901760
    %2708 = vmatpush1.msra.mxu0 %v2707
    %v2709 = vand.u32 %v128, 4294901760
    %2710 = vmatprep.subr.mxu0 %v2709
    %v2711 = vand.u32 %v127, 4294901760
    %2712 = vmatpush1.msra.mxu0 %v2711
    %v2713 = vand.u32 %v126, 4294901760
    %2714 = vmatprep.subr.mxu0 %v2713
    %v2715 = vand.u32 %v125, 4294901760
    %2716 = vmatpush1.msra.mxu0 %v2715
    %v2717 = vand.u32 %v124, 4294901760
    %2718 = vmatprep.subr.mxu0 %v2717
    %v2719 = vand.u32 %v123, 4294901760
    %2720 = vmatpush1.msra.mxu0 %v2719
    %v2721 = vand.u32 %v122, 4294901760
    %2722 = vmatprep.subr.mxu0 %v2721
    %v2723 = vand.u32 %v121, 4294901760
    %2724 = vmatpush1.msra.mxu0 %v2723
    %v2725 = vand.u32 %v120, 4294901760
    %2726 = vmatprep.subr.mxu0 %v2725
    %v2727 = vand.u32 %v119, 4294901760
    %2728 = vmatpush1.msra.mxu0 %v2727
    %v2729 = vand.u32 %v118, 4294901760
    %2730 = vmatprep.subr.mxu0 %v2729
    %v2731 = vand.u32 %v117, 4294901760
    %2732 = vmatpush1.msra.mxu0 %v2731
    %v2733 = vand.u32 %v116, 4294901760
    %2734 = vmatprep.subr.mxu0 %v2733
    %v2735 = vand.u32 %v115, 4294901760
    %2736 = vmatpush1.msra.mxu0 %v2735
    %v2737 = vand.u32 %v114, 4294901760
    %2738 = vmatprep.subr.mxu0 %v2737
    %v2739 = vand.u32 %v113, 4294901760
    %2740 = vmatpush1.msra.mxu0 %v2739
    %v2741 = vand.u32 %v112, 4294901760
    %2742 = vmatprep.subr.mxu0 %v2741
    %v2743 = vand.u32 %v111, 4294901760
    %2744 = vmatpush1.msra.mxu0 %v2743
    %v2745 = vand.u32 %v110, 4294901760
    %2746 = vmatprep.subr.mxu0 %v2745
    %v2747 = vand.u32 %v109, 4294901760
    %2748 = vmatpush1.msra.mxu0 %v2747
    %v2749 = vand.u32 %v172, 4294901760
    %2750 = vmatprep.subr.mxu0 %v2749
    %v2751 = vand.u32 %v171, 4294901760
    %2752 = vmatpush2.msra.mxu0 %v2751
    %v2753 = vand.u32 %v170, 4294901760
    %2754 = vmatprep.subr.mxu0 %v2753
    %v2755 = vand.u32 %v169, 4294901760
    %2756 = vmatpush2.msra.mxu0 %v2755
    %v2757 = vand.u32 %v168, 4294901760
    %2758 = vmatprep.subr.mxu0 %v2757
    %v2759 = vand.u32 %v167, 4294901760
    %2760 = vmatpush2.msra.mxu0 %v2759
    %v2761 = vand.u32 %v166, 4294901760
    %2762 = vmatprep.subr.mxu0 %v2761
    %v2763 = vand.u32 %v165, 4294901760
    %2764 = vmatpush2.msra.mxu0 %v2763
    %v2765 = vand.u32 %v164, 4294901760
    %2766 = vmatprep.subr.mxu0 %v2765
    %v2767 = vand.u32 %v163, 4294901760
    %2768 = vmatpush2.msra.mxu0 %v2767
    %v2769 = vand.u32 %v162, 4294901760
    %2770 = vmatprep.subr.mxu0 %v2769
    %v2771 = vand.u32 %v161, 4294901760
    %2772 = vmatpush2.msra.mxu0 %v2771
    %v2773 = vand.u32 %v160, 4294901760
    %2774 = vmatprep.subr.mxu0 %v2773
    %v2775 = vand.u32 %v159, 4294901760
    %2776 = vmatpush2.msra.mxu0 %v2775
    %v2777 = vand.u32 %v158, 4294901760
    %2778 = vmatprep.subr.mxu0 %v2777
    %v2779 = vand.u32 %v157, 4294901760
    %2780 = vmatpush2.msra.mxu0 %v2779
    %v2781 = vand.u32 %v156, 4294901760
    %2782 = vmatprep.subr.mxu0 %v2781
    %v2783 = vand.u32 %v155, 4294901760
    %2784 = vmatpush2.msra.mxu0 %v2783
    %v2785 = vand.u32 %v154, 4294901760
    %2786 = vmatprep.subr.mxu0 %v2785
    %v2787 = vand.u32 %v153, 4294901760
    %2788 = vmatpush2.msra.mxu0 %v2787
    %v2789 = vand.u32 %v152, 4294901760
    %2790 = vmatprep.subr.mxu0 %v2789
    %v2791 = vand.u32 %v151, 4294901760
    %2792 = vmatpush2.msra.mxu0 %v2791
    %v2793 = vand.u32 %v150, 4294901760
    %2794 = vmatprep.subr.mxu0 %v2793
    %v2795 = vand.u32 %v149, 4294901760
    %2796 = vmatpush2.msra.mxu0 %v2795
    %v2797 = vand.u32 %v148, 4294901760
    %2798 = vmatprep.subr.mxu0 %v2797
    %v2799 = vand.u32 %v147, 4294901760
    %2800 = vmatpush2.msra.mxu0 %v2799
    %v2801 = vand.u32 %v146, 4294901760
    %2802 = vmatprep.subr.mxu0 %v2801
    %v2803 = vand.u32 %v145, 4294901760
    %2804 = vmatpush2.msra.mxu0 %v2803
    %v2805 = vand.u32 %v144, 4294901760
    %2806 = vmatprep.subr.mxu0 %v2805
    %v2807 = vand.u32 %v143, 4294901760
    %2808 = vmatpush2.msra.mxu0 %v2807
    %v2809 = vand.u32 %v142, 4294901760
    %2810 = vmatprep.subr.mxu0 %v2809
    %v2811 = vand.u32 %v141, 4294901760
    %2812 = vmatpush2.msra.mxu0 %v2811
    %v2813 = vand.u32 %v1535, 4294901760
    %2814 = vmatprep.mubr.f32.mxu0 %v2813
    %v2815 = vand.u32 %v1534, 4294901760
    %2816 = vmatmul.mubr.f32.gmra.mxu0 %v2815
    %v2817 = vpop.f32.mrf.mxu0
    %v2818 = vadd.f32 %v2681, %v2817
    %v2819 = vpop.f32.mrf.mxu0
    %v2820 = vadd.f32 %v2683, %v2819
    %2821 = vdwg.mxu0
    %s2822 = sld [smem:[#allocation2]]
    %v2823 = vstv %s2822
    %v2824 = vadd.f32 %v2818, %v2823
    %v2825 = vadd.f32 %v2820, %v2823
    %v2826 = vxor.u32 %v2824, 2147483648
    %v2827 = vxor.u32 %v2825, 2147483648
    %v2828 = vmul.f32 %v2826, 1.442695
    %v2829 = vpow.pop %v2828
    %v2830 = vmul.f32 %v2827, 1.442695
    %v2831 = vpow.pop %v2830
    %v2832 = vadd.f32 %v2829, 1.0
    %v2833 = vadd.f32 %v2831, 1.0
    %v2834 = vrcp.pop %v2832
    %v2835 = vmul.f32 1.0, %v2834
    %v2836 = vrcp.pop %v2833
    %v2837 = vmul.f32 1.0, %v2836
    %v2840 = vcombine.low %v2835, %v2837
    %v2842 = vunpack.c.l.s4 1966171168
    %v2843 = vunpack.c.0.s8 %v2842
    %v2844 = vlaneseq
    %v2845 = vshrl.u32 %v2844, 7
    %v2846 = vsub.s32 %v2843, %v2845
    %v2847 = vrot.slane %v2840, %v2846
    %v2848 = vcombine.high %v2847, %v2847
    %v2850 = vunpack.c.l.s4 1966171168
    %v2851 = vunpack.c.0.s8 %v2850
    %v2852 = vlaneseq
    %v2853 = vshrl.u32 %v2852, 7
    %v2854 = vsub.s32 %v2851, %v2853
    %v2855 = vrot.slane %v2847, %v2854
    %v2857 = vunpack.c.l.s4 1966171168
    %v2858 = vunpack.c.0.s8 %v2857
    %v2859 = vlaneseq
    %v2860 = vshrl.u32 %v2859, 7
    %v2861 = vsub.s32 %v2858, %v2860
    %v2862 = vrot.slane %v2848, %v2861
    %v2863 = vlaneseq
    %v2864 = vshrl.u32 %v2863, 7
    %v2865 = vsub.s32 0, %v2864
    %v2866 = vrot.slane %v2855, %v2865
    %v2867 = vlaneseq
    %v2868 = vshrl.u32 %v2867, 7
    %v2869 = vsub.s32 1, %v2868
    %v2870 = vrot.slane %v2855, %v2869
    %v2871 = vlaneseq
    %v2872 = vshrl.u32 %v2871, 7
    %v2873 = vsub.s32 0, %v2872
    %v2874 = vrot.slane %v2862, %v2873
    %v2875 = vlaneseq
    %v2876 = vshrl.u32 %v2875, 7
    %v2877 = vsub.s32 1, %v2876
    %v2878 = vrot.slane %v2862, %v2877
    %v2879 = vcombine.low %v2866, %v2870
    %v2880 = vcombine.low %v2874, %v2878
    %v2883 = vmul.f32 %v44, %v2879
    %v2884 = vmul.f32 %v45, %v2880
    %2885 = vst [vmem:[#allocation8] sm:$0xff] %v2883
    %2886 = vst [vmem:[#allocation8 + $0x8] sm:$0xff] %v2884
    // Predicated region
    $region22: #{tpu_custom_call.1} parent=1 // pred_check
      _
    $region23: #{tpu_custom_call.1} parent=1 // pred_check_branch
      %2888 = sbr.rel (0) target = $region25
    $region24: #{tpu_custom_call.1} parent=1 // pred_region
      %s2890 = ssub.s32 256, 256
      %2891 = vsyncadd [#allocation5], %s2890
      %s2892 = sshll.u32 [#allocation8], 4
      %s2893 = int_to_ptr.vmem [resolvable:$true] %s2892
      %2898 = dma.vmem_to_hbm [thread:$0]  %s2893, 256, %s3, [#allocation5], 128, 128, 8
    $region25: #{tpu_custom_call.1} parent=1 // pred_fallthru
      _
    // Predicated region
    $region26: #{tpu_custom_call.1} parent=1 // pred_check
      _
    $region27: #{tpu_custom_call.1} parent=1 // pred_check_branch
      %2900 = sbr.rel (0) target = $region29
    $region28: #{tpu_custom_call.1} parent=1 // pred_region
      %2901 = dma.done [#allocation5], 256
    $region29: #{tpu_custom_call.1} parent=1 // pred_fallthru
      _
    %2902 = vsyncpa [#allocation4], 1
    %2903 = vsyncpa [#allocation7], 1
    %2904 = vsyncpa [#allocation5], 1

</llo_original>
